<compile_context>
chip_gen: v5e
topology: v5e:2x2
jax: 0.10.0
libtpu: 0.0.40
codegen_flags: <defaults>
</compile_context>

<pallas_src>
import math
from functools import partial

import jax
import jax.numpy as jnp
from jax import lax
from jax.experimental import pallas as pl
from jax.experimental.pallas import tpu as pltpu


def _layernorm(x, gamma, beta, eps=1e-5):
    mean = jnp.mean(x, axis=-1, keepdims=True)
    var = jnp.mean((x - mean) ** 2, axis=-1, keepdims=True)
    return (x - mean) * lax.rsqrt(var + eps) * gamma + beta


def _erf(x):
    # Abramowitz & Stegun 7.1.26 (max abs error ~1.5e-7). Uses only exp/mul/add
    # so it lowers cleanly in Mosaic (no dependence on an erf primitive).
    a1, a2, a3, a4, a5 = 0.254829592, -0.284496736, 1.421413741, -1.453152027, 1.061405429
    p = 0.3275911
    ax = jnp.abs(x)
    t = 1.0 / (1.0 + p * ax)
    poly = ((((a5 * t + a4) * t + a3) * t + a2) * t + a1) * t
    e = 1.0 - poly * jnp.exp(-ax * ax)
    return jnp.where(x >= 0, e, -e)


def _gelu_exact(x):
    # torch.nn.GELU() default: exact erf formulation.
    return 0.5 * x * (1.0 + _erf(x * (1.0 / math.sqrt(2.0))))


def _attention_block_kernel(
    x_ref,
    g1_ref, be1_ref,                       # LayerNorm 1
    wqkv_ref, bqkv_ref,                    # fused QKV: (E, 3E) bf16, (1, 3E) f32 (q pre-scaled)
    wot_ref, bo_ref,                       # out_proj: (E, E) bf16, (1, E) f32
    g2_ref, be2_ref,                       # LayerNorm 2
    w1t_ref, b1_ref, w2t_ref, b2_ref,      # MLP: (E, H) bf16, (1, H) f32, (H, E) bf16, (1, E) f32
    o_ref,
    qh_ref, kh_ref, vh_ref, attn_ref,      # VMEM scratch
    *, num_heads, kv_chunk, h_chunk,
):
    x = x_ref[...].astype(jnp.float32)                      # (S, E)
    S, E = x.shape
    nh = num_heads
    dh = E // nh

    # ---- LayerNorm 1 (f32) ----
    x_ln = _layernorm(x, g1_ref[...], be1_ref[...])

    # ---- fused QKV projection: one (S,E)@(E,3E) bf16 MXU contraction ----
    qkv = jnp.dot(x_ln.astype(jnp.bfloat16), wqkv_ref[...],
                  preferred_element_type=jnp.float32) + bqkv_ref[...]   # (S, 3E) f32

    # Head split via static per-head stores into scratch (no lax.transpose).
    for h in range(nh):
        qh_ref[h] = qkv[:, h * dh:(h + 1) * dh].astype(jnp.bfloat16)
        kh_ref[h] = qkv[:, E + h * dh:E + (h + 1) * dh].astype(jnp.bfloat16)
        vh_ref[h] = qkv[:, 2 * E + h * dh:2 * E + (h + 1) * dh].astype(jnp.bfloat16)
    qh = qh_ref[...]                                         # (nh, S, dh) bf16

    # ---- online-softmax attention over KV chunks (scores bounded to S x kc) ----
    n_kv = S // kv_chunk

    def kv_body(i, carry):
        m_i, l_i, acc = carry
        k0 = pl.multiple_of(i * kv_chunk, kv_chunk)
        k_c = kh_ref[:, pl.ds(k0, kv_chunk), :]              # (nh, kc, dh) bf16
        v_c = vh_ref[:, pl.ds(k0, kv_chunk), :]
        s = jnp.einsum('hqd,hkd->hqk', qh, k_c,
                       preferred_element_type=jnp.float32)   # (nh, S, kc) f32
        m_new = jnp.maximum(m_i, jnp.max(s, axis=-1, keepdims=True))
        alpha = jnp.exp(m_i - m_new)
        p = jnp.exp(s - m_new)
        l_new = alpha * l_i + jnp.sum(p, axis=-1, keepdims=True)
        acc_new = alpha * acc + jnp.einsum('hqk,hkd->hqd', p.astype(jnp.bfloat16),
                                           v_c, preferred_element_type=jnp.float32)
        return m_new, l_new, acc_new

    m0 = jnp.full((nh, S, 1), -jnp.inf, dtype=jnp.float32)
    l0 = jnp.zeros((nh, S, 1), dtype=jnp.float32)
    a0 = jnp.zeros((nh, S, dh), dtype=jnp.float32)
    m_i, l_i, acc = lax.fori_loop(0, n_kv, kv_body, (m0, l0, a0), unroll=n_kv <= 4)

    # Softmax denominator on the EUP slot (+1 Newton step -> f32 accuracy).
    inv_l = pl.reciprocal(l_i, approx=True)
    inv_l = inv_l * (2.0 - l_i * inv_l)
    out_h = acc * inv_l                                      # (nh, S, dh) f32

    # Head merge via static per-head stores, then one full-width (E,E) matmul.
    for h in range(nh):
        attn_ref[:, h * dh:(h + 1) * dh] = out_h[h]
    attn = jnp.dot(attn_ref[...].astype(jnp.bfloat16), wot_ref[...],
                   preferred_element_type=jnp.float32) + bo_ref[...]

    x1 = x + attn

    # ---- LayerNorm 2 + MLP (hidden dim chunked to bound the (S,H) live set) ----
    x_ln2 = _layernorm(x1, g2_ref[...], be2_ref[...]).astype(jnp.bfloat16)
    Hdim = w1t_ref.shape[1]
    n_h = Hdim // h_chunk

    def mlp_body(i, mlp_acc):
        c0 = pl.multiple_of(i * h_chunk, h_chunk)
        h1 = jnp.dot(x_ln2, w1t_ref[:, pl.ds(c0, h_chunk)],
                     preferred_element_type=jnp.float32) + b1_ref[:, pl.ds(c0, h_chunk)]
        h1 = _gelu_exact(h1)
        return mlp_acc + jnp.dot(h1.astype(jnp.bfloat16),
                                 w2t_ref[pl.ds(c0, h_chunk), :],
                                 preferred_element_type=jnp.float32)

    mlp = lax.fori_loop(0, n_h, mlp_body, jnp.zeros((S, E), jnp.float32),
                        unroll=n_h <= 4)
    mlp = mlp + b2_ref[...]

    o_ref[...] = (x1 + mlp).astype(o_ref.dtype)


def prepare_params(params, num_heads):
    """One-time weight prep (hoisted out of the forward call): fold the
    1/sqrt(dh) attention scale into Q, fuse QKV into one (E, 3E) weight,
    pre-transpose everything and cast MXU weights to bf16."""
    E = params["wq"].shape[0]
    dh = E // num_heads
    scale = 1.0 / math.sqrt(dh)
    wqkv = jnp.concatenate(
        [(params["wq"] * scale).T, params["wk"].T, params["wv"].T], axis=1)   # (E, 3E)
    bqkv = jnp.concatenate(
        [params["bq"] * scale, params["bk"], params["bv"]], axis=1)           # (1, 3E)
    return {
        "g1": params["g1"], "be1": params["be1"],
        "wqkv": wqkv.astype(jnp.bfloat16), "bqkv": bqkv.astype(jnp.float32),
        "wot": params["wo"].T.astype(jnp.bfloat16), "bo": params["bo"],
        "g2": params["g2"], "be2": params["be2"],
        "w1t": params["w1"].T.astype(jnp.bfloat16), "b1": params["b1"],
        "w2t": params["w2"].T.astype(jnp.bfloat16), "b2": params["b2"],
    }


def _pick_chunk(total, cap, mult):
    """Largest divisor of `total` that is <= cap, preferring multiples of `mult`."""
    if total <= cap:
        return total
    cands = [c for c in range(mult, cap + 1, mult) if total % c == 0]
    if not cands:
        cands = [c for c in range(1, cap + 1) if total % c == 0]
    return max(cands)


def _vmem_capacity_bytes():
    try:
        cap = getattr(pltpu.get_tpu_info(), "vmem_capacity_bytes", None)
        if cap:
            return int(cap)
    except Exception:
        pass
    return 64 * 1024 * 1024   # conservative fallback (v7x-sized)


@partial(jax.jit, static_argnums=(2,))
def attention_block(x_sbe, prep, num_heads):
    """x_sbe: (S, B, E) like PyTorch nn.MultiheadAttention default layout."""
    S, B, E = x_sbe.shape
    H = prep["w1t"].shape[1]
    nh = num_heads
    dh = E // nh
    x = jnp.transpose(x_sbe, (1, 0, 2))                    # (B, S, E)

    kv_chunk = _pick_chunk(S, 512, 8)
    h_chunk = _pick_chunk(H, 512, 128)

    # VMEM budget, sized per generation (v5e/v6e: 128 MiB, v7x: 64 MiB physical).
    bf16, f32 = 2, 4
    weight_bytes = bf16 * (4 * E * E + 2 * E * H) + f32 * (12 * E + H)
    io_bytes = f32 * 2 * S * E
    scratch_bytes = bf16 * 3 * S * E + f32 * S * E
    inter_bytes = f32 * (10 * S * E + nh * S * (kv_chunk + dh + 2) + 2 * S * h_chunk)
    est = 2 * (weight_bytes + io_bytes) + scratch_bytes + inter_bytes
    cap = _vmem_capacity_bytes()
    vmem_limit = int(min(int(0.85 * cap), max(48 * 1024 * 1024, 2 * est)))

    full = lambda shape: pl.BlockSpec(shape, lambda b: (0,) * len(shape))
    kernel = partial(_attention_block_kernel, num_heads=nh,
                     kv_chunk=kv_chunk, h_chunk=h_chunk)
    out = pl.pallas_call(
        kernel,
        out_shape=jax.ShapeDtypeStruct((B, S, E), x_sbe.dtype),
        grid=(B,),
        in_specs=[
            pl.BlockSpec((None, S, E), lambda b: (b, 0, 0)),   # x
            full((1, E)), full((1, E)),                        # ln1 gamma, beta
            full((E, 3 * E)), full((1, 3 * E)),                # fused QKV weight / bias
            full((E, E)), full((1, E)),                        # Wo^T, bo
            full((1, E)), full((1, E)),                        # ln2 gamma, beta
            full((E, H)), full((1, H)),                        # W1^T, b1
            full((H, E)), full((1, E)),                        # W2^T, b2
        ],
        out_specs=pl.BlockSpec((None, S, E), lambda b: (b, 0, 0)),
        scratch_shapes=[
            pltpu.VMEM((nh, S, dh), jnp.bfloat16),   # q heads
            pltpu.VMEM((nh, S, dh), jnp.bfloat16),   # k heads
            pltpu.VMEM((nh, S, dh), jnp.bfloat16),   # v heads
            pltpu.VMEM((S, E), jnp.float32),         # merged attention output
        ],
        compiler_params=pltpu.CompilerParams(
            dimension_semantics=("parallel",),
            vmem_limit_bytes=vmem_limit,
        ),
    )(
        x,
        prep["g1"], prep["be1"],
        prep["wqkv"], prep["bqkv"],
        prep["wot"], prep["bo"],
        prep["g2"], prep["be2"],
        prep["w1t"], prep["b1"],
        prep["w2t"], prep["b2"],
    )
    return jnp.transpose(out, (1, 0, 2))                   # back to (S, B, E)


def reference_block(x_sbe, p, num_heads):
    """Pure-JAX f32 reference mirroring the PyTorch forward, for verification."""
    S, B, E = x_sbe.shape
    dh = E // num_heads

    def ln(x, g, b):
        m = jnp.mean(x, -1, keepdims=True)
        v = jnp.mean((x - m) ** 2, -1, keepdims=True)
        return (x - m) / jnp.sqrt(v + 1e-5) * g[0] + b[0]

    x = x_sbe
    xl = ln(x, p["g1"], p["be1"])
    q = xl @ p["wq"].T + p["bq"][0]
    k = xl @ p["wk"].T + p["bk"][0]
    v = xl @ p["wv"].T + p["bv"][0]

    def heads(t):  # (S,B,E) -> (B, nh, S, dh)
        return jnp.transpose(t.reshape(S, B, num_heads, dh), (1, 2, 0, 3))

    qh, kh, vh = heads(q), heads(k), heads(v)
    scores = jnp.einsum("bhqd,bhkd->bhqk", qh, kh) / math.sqrt(dh)
    pr = jax.nn.softmax(scores, axis=-1)
    oh = jnp.einsum("bhqk,bhkd->bhqd", pr, vh)
    o = jnp.transpose(oh, (2, 0, 1, 3)).reshape(S, B, E)
    attn = o @ p["wo"].T + p["bo"][0]
    x1 = x + attn
    xl2 = ln(x1, p["g2"], p["be2"])
    h = xl2 @ p["w1"].T + p["b1"][0]
    h = 0.5 * h * (1.0 + lax.erf(h / math.sqrt(2.0)))
    h = h @ p["w2"].T + p["b2"][0]
    return x1 + h


def init_params(key, embed_dim, hidden_dim):
    ks = jax.random.split(key, 8)
    E, H = embed_dim, hidden_dim
    n = lambda k, s: (0.02 * jax.random.normal(k, s)).astype(jnp.float32)
    return {
        "g1": jnp.ones((1, E), jnp.float32), "be1": jnp.zeros((1, E), jnp.float32),
        "wq": n(ks[0], (E, E)), "wk": n(ks[1], (E, E)), "wv": n(ks[2], (E, E)),
        "bq": n(ks[3], (1, E)), "bk": n(ks[4], (1, E)), "bv": n(ks[5], (1, E)),
        "wo": n(ks[6], (E, E)), "bo": jnp.zeros((1, E), jnp.float32),
        "g2": jnp.ones((1, E), jnp.float32), "be2": jnp.zeros((1, E), jnp.float32),
        "w1": n(ks[7], (H, E)), "b1": jnp.zeros((1, H), jnp.float32),
        "w2": n(jax.random.fold_in(key, 99), (E, H)), "b2": jnp.zeros((1, E), jnp.float32),
    }


if __name__ == "__main__":
    # E=128 keeps output stores lane-dense (multiple of 128 lanes).
    SEQ, BATCH, EMBED, HIDDEN, NUM_HEADS = 16, 2, 128, 256, 4
    key = jax.random.PRNGKey(0)
    kx, kp = jax.random.split(key)
    x = jax.random.normal(kx, (SEQ, BATCH, EMBED), dtype=jnp.float32)
    params = init_params(kp, EMBED, HIDDEN)
    prep = prepare_params(params, NUM_HEADS)   # one-time weight prep (hoisted)

    out = attention_block(x, prep, NUM_HEADS)
    out = jax.block_until_ready(out)

    ref = reference_block(x, params, NUM_HEADS)
    assert out.shape == (SEQ, BATCH, EMBED)
    # bf16 MXU operands -> tolerance loosened vs. the pure-f32 reference.
    assert jnp.allclose(out, ref, atol=2e-2, rtol=2e-2), "mismatch vs reference"
    print("KERNEL_OK")
</pallas_src>

<mosaic_0001>
module attributes {stable_mosaic.version = 11 : i64} {
  func.func @_attention_block_kernel(%arg0: i32, %arg1: memref<1x16x128xf32, #tpu.memory_space<vmem>>, %arg2: memref<1x128xf32, #tpu.memory_space<vmem>>, %arg3: memref<1x128xf32, #tpu.memory_space<vmem>>, %arg4: memref<128x384xbf16, #tpu.memory_space<vmem>>, %arg5: memref<1x384xf32, #tpu.memory_space<vmem>>, %arg6: memref<128x128xbf16, #tpu.memory_space<vmem>>, %arg7: memref<1x128xf32, #tpu.memory_space<vmem>>, %arg8: memref<1x128xf32, #tpu.memory_space<vmem>>, %arg9: memref<1x128xf32, #tpu.memory_space<vmem>>, %arg10: memref<128x256xbf16, #tpu.memory_space<vmem>>, %arg11: memref<1x256xf32, #tpu.memory_space<vmem>>, %arg12: memref<256x128xbf16, #tpu.memory_space<vmem>>, %arg13: memref<1x128xf32, #tpu.memory_space<vmem>>, %arg14: memref<1x16x128xf32, #tpu.memory_space<vmem>>, %arg15: memref<4x16x32xbf16, #tpu.memory_space<vmem>>, %arg16: memref<4x16x32xbf16, #tpu.memory_space<vmem>>, %arg17: memref<4x16x32xbf16, #tpu.memory_space<vmem>>, %arg18: memref<16x128xf32, #tpu.memory_space<vmem>>) attributes {dimension_semantics = [#tpu.dimension_semantics<parallel>], iteration_bounds = array<i64: 2>, scalar_prefetch = 0 : i64, scratch_operands = 4 : i64, tpu.core_type = #tpu.core_type<tc>, window_params = [{transform_indices = @transform_0, window_bounds = array<i64: 1, 16, 128>}, {pipeline_mode = #tpu.pipeline_mode<synchronous>, transform_indices = @transform_1, window_bounds = array<i64: 1, 128>}, {pipeline_mode = #tpu.pipeline_mode<synchronous>, transform_indices = @transform_2, window_bounds = array<i64: 1, 128>}, {pipeline_mode = #tpu.pipeline_mode<synchronous>, transform_indices = @transform_3, window_bounds = array<i64: 128, 384>}, {pipeline_mode = #tpu.pipeline_mode<synchronous>, transform_indices = @transform_4, window_bounds = array<i64: 1, 384>}, {pipeline_mode = #tpu.pipeline_mode<synchronous>, transform_indices = @transform_5, window_bounds = array<i64: 128, 128>}, {pipeline_mode = #tpu.pipeline_mode<synchronous>, transform_indices = @transform_6, window_bounds = array<i64: 1, 128>}, {pipeline_mode = #tpu.pipeline_mode<synchronous>, transform_indices = @transform_7, window_bounds = array<i64: 1, 128>}, {pipeline_mode = #tpu.pipeline_mode<synchronous>, transform_indices = @transform_8, window_bounds = array<i64: 1, 128>}, {pipeline_mode = #tpu.pipeline_mode<synchronous>, transform_indices = @transform_9, window_bounds = array<i64: 128, 256>}, {pipeline_mode = #tpu.pipeline_mode<synchronous>, transform_indices = @transform_10, window_bounds = array<i64: 1, 256>}, {pipeline_mode = #tpu.pipeline_mode<synchronous>, transform_indices = @transform_11, window_bounds = array<i64: 256, 128>}, {pipeline_mode = #tpu.pipeline_mode<synchronous>, transform_indices = @transform_12, window_bounds = array<i64: 1, 128>}, {transform_indices = @transform_13, window_bounds = array<i64: 1, 16, 128>}]} {
    %c0 = arith.constant 0 : index
    %c0_0 = arith.constant 0 : index
    %c0_1 = arith.constant 0 : index
    %0 = vector.load %arg1[%c0, %c0_0, %c0_1] : memref<1x16x128xf32, #tpu.memory_space<vmem>>, vector<1x16x128xf32>
    %1 = vector.shape_cast %0 : vector<1x16x128xf32> to vector<16x128xf32>
    %c0_2 = arith.constant 0 : index
    %c0_3 = arith.constant 0 : index
    %2 = vector.load %arg2[%c0_2, %c0_3] : memref<1x128xf32, #tpu.memory_space<vmem>>, vector<1x128xf32>
    %c0_4 = arith.constant 0 : index
    %c0_5 = arith.constant 0 : index
    %3 = vector.load %arg3[%c0_4, %c0_5] : memref<1x128xf32, #tpu.memory_space<vmem>>, vector<1x128xf32>
    %cst = arith.constant dense<0.000000e+00> : vector<16xf32>
    %4 = vector.multi_reduction <add>, %1, %cst [1] : vector<16x128xf32> to vector<16xf32>
    %5 = vector.shape_cast %4 : vector<16xf32> to vector<16x1xf32>
    %cst_6 = arith.constant 1.280000e+02 : f32
    %6 = vector.broadcast %cst_6 : f32 to vector<16x1xf32>
    %7 = arith.divf %5, %6 : vector<16x1xf32>
    %8 = vector.broadcast %7 : vector<16x1xf32> to vector<16x128xf32>
    %9 = arith.subf %1, %8 : vector<16x128xf32>
    %10 = arith.mulf %9, %9 : vector<16x128xf32>
    %cst_7 = arith.constant dense<0.000000e+00> : vector<16xf32>
    %11 = vector.multi_reduction <add>, %10, %cst_7 [1] : vector<16x128xf32> to vector<16xf32>
    %12 = vector.shape_cast %11 : vector<16xf32> to vector<16x1xf32>
    %cst_8 = arith.constant 1.280000e+02 : f32
    %13 = vector.broadcast %cst_8 : f32 to vector<16x1xf32>
    %14 = arith.divf %12, %13 : vector<16x1xf32>
    %15 = vector.broadcast %7 : vector<16x1xf32> to vector<16x128xf32>
    %16 = arith.subf %1, %15 : vector<16x128xf32>
    %cst_9 = arith.constant 9.99999974E-6 : f32
    %17 = vector.broadcast %cst_9 : f32 to vector<16x1xf32>
    %18 = arith.addf %14, %17 : vector<16x1xf32>
    %19 = math.rsqrt %18 : vector<16x1xf32>
    %20 = vector.broadcast %19 : vector<16x1xf32> to vector<16x128xf32>
    %21 = arith.mulf %16, %20 : vector<16x128xf32>
    %22 = vector.broadcast %2 : vector<1x128xf32> to vector<16x128xf32>
    %23 = arith.mulf %21, %22 : vector<16x128xf32>
    %24 = vector.broadcast %3 : vector<1x128xf32> to vector<16x128xf32>
    %25 = arith.addf %23, %24 : vector<16x128xf32>
    %26 = arith.truncf %25 : vector<16x128xf32> to vector<16x128xbf16>
    %c0_10 = arith.constant 0 : index
    %c0_11 = arith.constant 0 : index
    %27 = vector.load %arg4[%c0_10, %c0_11] : memref<128x384xbf16, #tpu.memory_space<vmem>>, vector<128x384xbf16>
    %cst_12 = arith.constant dense<0.000000e+00> : vector<16x384xf32>
    %28 = tpu.matmul %26, %27, %cst_12 {dimension_numbers = #tpu.dot_dimension_numbers<[1], [0], [0], [1], [0, 0, 1, 1], [], []>} : vector<16x128xbf16>, vector<128x384xbf16>, vector<16x384xf32> -> vector<16x384xf32>
    %c0_13 = arith.constant 0 : index
    %c0_14 = arith.constant 0 : index
    %29 = vector.load %arg5[%c0_13, %c0_14] : memref<1x384xf32, #tpu.memory_space<vmem>>, vector<1x384xf32>
    %30 = vector.broadcast %29 : vector<1x384xf32> to vector<16x384xf32>
    %31 = arith.addf %28, %30 : vector<16x384xf32>
    %32 = vector.extract_strided_slice %31 {offsets = [0, 0], sizes = [16, 32], strides = [1, 1]} : vector<16x384xf32> to vector<16x32xf32>
    %33 = arith.truncf %32 : vector<16x32xf32> to vector<16x32xbf16>
    %c0_15 = arith.constant 0 : index
    %c0_16 = arith.constant 0 : index
    %c0_17 = arith.constant 0 : index
    %34 = vector.load %arg15[%c0_15, %c0_16, %c0_17] : memref<4x16x32xbf16, #tpu.memory_space<vmem>>, vector<1x16x32xbf16>
    %35 = vector.shape_cast %34 : vector<1x16x32xbf16> to vector<16x32xbf16>
    %36 = vector.shape_cast %33 : vector<16x32xbf16> to vector<1x16x32xbf16>
    tpu.vector_store %arg15[%c0_15, %c0_16, %c0_17], %36 {strides = array<i32>} : memref<4x16x32xbf16, #tpu.memory_space<vmem>>, vector<1x16x32xbf16>,
    %37 = vector.extract_strided_slice %31 {offsets = [0, 128], sizes = [16, 32], strides = [1, 1]} : vector<16x384xf32> to vector<16x32xf32>
    %38 = arith.truncf %37 : vector<16x32xf32> to vector<16x32xbf16>
    %c0_18 = arith.constant 0 : index
    %c0_19 = arith.constant 0 : index
    %c0_20 = arith.constant 0 : index
    %39 = vector.load %arg16[%c0_18, %c0_19, %c0_20] : memref<4x16x32xbf16, #tpu.memory_space<vmem>>, vector<1x16x32xbf16>
    %40 = vector.shape_cast %39 : vector<1x16x32xbf16> to vector<16x32xbf16>
    %41 = vector.shape_cast %38 : vector<16x32xbf16> to vector<1x16x32xbf16>
    tpu.vector_store %arg16[%c0_18, %c0_19, %c0_20], %41 {strides = array<i32>} : memref<4x16x32xbf16, #tpu.memory_space<vmem>>, vector<1x16x32xbf16>,
    %42 = vector.extract_strided_slice %31 {offsets = [0, 256], sizes = [16, 32], strides = [1, 1]} : vector<16x384xf32> to vector<16x32xf32>
    %43 = arith.truncf %42 : vector<16x32xf32> to vector<16x32xbf16>
    %c0_21 = arith.constant 0 : index
    %c0_22 = arith.constant 0 : index
    %c0_23 = arith.constant 0 : index
    %44 = vector.load %arg17[%c0_21, %c0_22, %c0_23] : memref<4x16x32xbf16, #tpu.memory_space<vmem>>, vector<1x16x32xbf16>
    %45 = vector.shape_cast %44 : vector<1x16x32xbf16> to vector<16x32xbf16>
    %46 = vector.shape_cast %43 : vector<16x32xbf16> to vector<1x16x32xbf16>
    tpu.vector_store %arg17[%c0_21, %c0_22, %c0_23], %46 {strides = array<i32>} : memref<4x16x32xbf16, #tpu.memory_space<vmem>>, vector<1x16x32xbf16>,
    %47 = vector.extract_strided_slice %31 {offsets = [0, 32], sizes = [16, 32], strides = [1, 1]} : vector<16x384xf32> to vector<16x32xf32>
    %48 = arith.truncf %47 : vector<16x32xf32> to vector<16x32xbf16>
    %c1 = arith.constant 1 : index
    %c0_24 = arith.constant 0 : index
    %c0_25 = arith.constant 0 : index
    %49 = vector.load %arg15[%c1, %c0_24, %c0_25] : memref<4x16x32xbf16, #tpu.memory_space<vmem>>, vector<1x16x32xbf16>
    %50 = vector.shape_cast %49 : vector<1x16x32xbf16> to vector<16x32xbf16>
    %51 = vector.shape_cast %48 : vector<16x32xbf16> to vector<1x16x32xbf16>
    tpu.vector_store %arg15[%c1, %c0_24, %c0_25], %51 {strides = array<i32>} : memref<4x16x32xbf16, #tpu.memory_space<vmem>>, vector<1x16x32xbf16>,
    %52 = vector.extract_strided_slice %31 {offsets = [0, 160], sizes = [16, 32], strides = [1, 1]} : vector<16x384xf32> to vector<16x32xf32>
    %53 = arith.truncf %52 : vector<16x32xf32> to vector<16x32xbf16>
    %c1_26 = arith.constant 1 : index
    %c0_27 = arith.constant 0 : index
    %c0_28 = arith.constant 0 : index
    %54 = vector.load %arg16[%c1_26, %c0_27, %c0_28] : memref<4x16x32xbf16, #tpu.memory_space<vmem>>, vector<1x16x32xbf16>
    %55 = vector.shape_cast %54 : vector<1x16x32xbf16> to vector<16x32xbf16>
    %56 = vector.shape_cast %53 : vector<16x32xbf16> to vector<1x16x32xbf16>
    tpu.vector_store %arg16[%c1_26, %c0_27, %c0_28], %56 {strides = array<i32>} : memref<4x16x32xbf16, #tpu.memory_space<vmem>>, vector<1x16x32xbf16>,
    %57 = vector.extract_strided_slice %31 {offsets = [0, 288], sizes = [16, 32], strides = [1, 1]} : vector<16x384xf32> to vector<16x32xf32>
    %58 = arith.truncf %57 : vector<16x32xf32> to vector<16x32xbf16>
    %c1_29 = arith.constant 1 : index
    %c0_30 = arith.constant 0 : index
    %c0_31 = arith.constant 0 : index
    %59 = vector.load %arg17[%c1_29, %c0_30, %c0_31] : memref<4x16x32xbf16, #tpu.memory_space<vmem>>, vector<1x16x32xbf16>
    %60 = vector.shape_cast %59 : vector<1x16x32xbf16> to vector<16x32xbf16>
    %61 = vector.shape_cast %58 : vector<16x32xbf16> to vector<1x16x32xbf16>
    tpu.vector_store %arg17[%c1_29, %c0_30, %c0_31], %61 {strides = array<i32>} : memref<4x16x32xbf16, #tpu.memory_space<vmem>>, vector<1x16x32xbf16>,
    %62 = vector.extract_strided_slice %31 {offsets = [0, 64], sizes = [16, 32], strides = [1, 1]} : vector<16x384xf32> to vector<16x32xf32>
    %63 = arith.truncf %62 : vector<16x32xf32> to vector<16x32xbf16>
    %c2 = arith.constant 2 : index
    %c0_32 = arith.constant 0 : index
    %c0_33 = arith.constant 0 : index
    %64 = vector.load %arg15[%c2, %c0_32, %c0_33] : memref<4x16x32xbf16, #tpu.memory_space<vmem>>, vector<1x16x32xbf16>
    %65 = vector.shape_cast %64 : vector<1x16x32xbf16> to vector<16x32xbf16>
    %66 = vector.shape_cast %63 : vector<16x32xbf16> to vector<1x16x32xbf16>
    tpu.vector_store %arg15[%c2, %c0_32, %c0_33], %66 {strides = array<i32>} : memref<4x16x32xbf16, #tpu.memory_space<vmem>>, vector<1x16x32xbf16>,
    %67 = vector.extract_strided_slice %31 {offsets = [0, 192], sizes = [16, 32], strides = [1, 1]} : vector<16x384xf32> to vector<16x32xf32>
    %68 = arith.truncf %67 : vector<16x32xf32> to vector<16x32xbf16>
    %c2_34 = arith.constant 2 : index
    %c0_35 = arith.constant 0 : index
    %c0_36 = arith.constant 0 : index
    %69 = vector.load %arg16[%c2_34, %c0_35, %c0_36] : memref<4x16x32xbf16, #tpu.memory_space<vmem>>, vector<1x16x32xbf16>
    %70 = vector.shape_cast %69 : vector<1x16x32xbf16> to vector<16x32xbf16>
    %71 = vector.shape_cast %68 : vector<16x32xbf16> to vector<1x16x32xbf16>
    tpu.vector_store %arg16[%c2_34, %c0_35, %c0_36], %71 {strides = array<i32>} : memref<4x16x32xbf16, #tpu.memory_space<vmem>>, vector<1x16x32xbf16>,
    %72 = vector.extract_strided_slice %31 {offsets = [0, 320], sizes = [16, 32], strides = [1, 1]} : vector<16x384xf32> to vector<16x32xf32>
    %73 = arith.truncf %72 : vector<16x32xf32> to vector<16x32xbf16>
    %c2_37 = arith.constant 2 : index
    %c0_38 = arith.constant 0 : index
    %c0_39 = arith.constant 0 : index
    %74 = vector.load %arg17[%c2_37, %c0_38, %c0_39] : memref<4x16x32xbf16, #tpu.memory_space<vmem>>, vector<1x16x32xbf16>
    %75 = vector.shape_cast %74 : vector<1x16x32xbf16> to vector<16x32xbf16>
    %76 = vector.shape_cast %73 : vector<16x32xbf16> to vector<1x16x32xbf16>
    tpu.vector_store %arg17[%c2_37, %c0_38, %c0_39], %76 {strides = array<i32>} : memref<4x16x32xbf16, #tpu.memory_space<vmem>>, vector<1x16x32xbf16>,
    %77 = vector.extract_strided_slice %31 {offsets = [0, 96], sizes = [16, 32], strides = [1, 1]} : vector<16x384xf32> to vector<16x32xf32>
    %78 = arith.truncf %77 : vector<16x32xf32> to vector<16x32xbf16>
    %c3 = arith.constant 3 : index
    %c0_40 = arith.constant 0 : index
    %c0_41 = arith.constant 0 : index
    %79 = vector.load %arg15[%c3, %c0_40, %c0_41] : memref<4x16x32xbf16, #tpu.memory_space<vmem>>, vector<1x16x32xbf16>
    %80 = vector.shape_cast %79 : vector<1x16x32xbf16> to vector<16x32xbf16>
    %81 = vector.shape_cast %78 : vector<16x32xbf16> to vector<1x16x32xbf16>
    tpu.vector_store %arg15[%c3, %c0_40, %c0_41], %81 {strides = array<i32>} : memref<4x16x32xbf16, #tpu.memory_space<vmem>>, vector<1x16x32xbf16>,
    %82 = vector.extract_strided_slice %31 {offsets = [0, 224], sizes = [16, 32], strides = [1, 1]} : vector<16x384xf32> to vector<16x32xf32>
    %83 = arith.truncf %82 : vector<16x32xf32> to vector<16x32xbf16>
    %c3_42 = arith.constant 3 : index
    %c0_43 = arith.constant 0 : index
    %c0_44 = arith.constant 0 : index
    %84 = vector.load %arg16[%c3_42, %c0_43, %c0_44] : memref<4x16x32xbf16, #tpu.memory_space<vmem>>, vector<1x16x32xbf16>
    %85 = vector.shape_cast %84 : vector<1x16x32xbf16> to vector<16x32xbf16>
    %86 = vector.shape_cast %83 : vector<16x32xbf16> to vector<1x16x32xbf16>
    tpu.vector_store %arg16[%c3_42, %c0_43, %c0_44], %86 {strides = array<i32>} : memref<4x16x32xbf16, #tpu.memory_space<vmem>>, vector<1x16x32xbf16>,
    %87 = vector.extract_strided_slice %31 {offsets = [0, 352], sizes = [16, 32], strides = [1, 1]} : vector<16x384xf32> to vector<16x32xf32>
    %88 = arith.truncf %87 : vector<16x32xf32> to vector<16x32xbf16>
    %c3_45 = arith.constant 3 : index
    %c0_46 = arith.constant 0 : index
    %c0_47 = arith.constant 0 : index
    %89 = vector.load %arg17[%c3_45, %c0_46, %c0_47] : memref<4x16x32xbf16, #tpu.memory_space<vmem>>, vector<1x16x32xbf16>
    %90 = vector.shape_cast %89 : vector<1x16x32xbf16> to vector<16x32xbf16>
    %91 = vector.shape_cast %88 : vector<16x32xbf16> to vector<1x16x32xbf16>
    tpu.vector_store %arg17[%c3_45, %c0_46, %c0_47], %91 {strides = array<i32>} : memref<4x16x32xbf16, #tpu.memory_space<vmem>>, vector<1x16x32xbf16>,
    %c0_48 = arith.constant 0 : index
    %c0_49 = arith.constant 0 : index
    %c0_50 = arith.constant 0 : index
    %92 = vector.load %arg15[%c0_48, %c0_49, %c0_50] : memref<4x16x32xbf16, #tpu.memory_space<vmem>>, vector<4x16x32xbf16>
    %cst_51 = arith.constant 0xFF800000 : f32
    %93 = vector.broadcast %cst_51 : f32 to vector<4x16x1xf32>
    %cst_52 = arith.constant 0.000000e+00 : f32
    %94 = vector.broadcast %cst_52 : f32 to vector<4x16x1xf32>
    %cst_53 = arith.constant 0.000000e+00 : f32
    %95 = vector.broadcast %cst_53 : f32 to vector<4x16x32xf32>
    %c0_i32 = arith.constant 0 : i32
    %c16_i32 = arith.constant 16 : i32
    %96 = arith.muli %c0_i32, %c16_i32 : i32
    %97 = tpu.assume_multiple %96, 16 : i32
    %c0_54 = arith.constant 0 : index
    %98 = arith.index_cast %97 : i32 to index
    %c0_55 = arith.constant 0 : index
    %99 = vector.load %arg16[%c0_54, %98, %c0_55] : memref<4x16x32xbf16, #tpu.memory_space<vmem>>, vector<4x16x32xbf16>
    %c0_56 = arith.constant 0 : index
    %100 = arith.index_cast %97 : i32 to index
    %c0_57 = arith.constant 0 : index
    %101 = vector.load %arg17[%c0_56, %100, %c0_57] : memref<4x16x32xbf16, #tpu.memory_space<vmem>>, vector<4x16x32xbf16>
    "tpu.trace_start"() <{level = 10 : i32, message = "hqd,hkd->hqk"}> : () -> ()
    %cst_58 = arith.constant dense<0.000000e+00> : vector<4x16x16xf32>
    %102 = tpu.matmul %92, %99, %cst_58 {dimension_numbers = #tpu.dot_dimension_numbers<[2], [2], [1], [1], [0, 0, 0, 1, 1, 1], [0], [0]>} : vector<4x16x32xbf16>, vector<4x16x32xbf16>, vector<4x16x16xf32> -> vector<4x16x16xf32>
    "tpu.trace_stop"() : () -> ()
    %cst_59 = arith.constant dense<0xFF800000> : vector<4x16xf32>
    %103 = vector.multi_reduction <maximumf>, %102, %cst_59 [2] : vector<4x16x16xf32> to vector<4x16xf32>
    %104 = vector.shape_cast %103 : vector<4x16xf32> to vector<4x16x1xf32>
    %105 = arith.maximumf %93, %104 : vector<4x16x1xf32>
    %106 = arith.subf %93, %105 : vector<4x16x1xf32>
    %107 = math.exp %106 : vector<4x16x1xf32>
    %108 = vector.broadcast %105 : vector<4x16x1xf32> to vector<4x16x16xf32>
    %109 = arith.subf %102, %108 : vector<4x16x16xf32>
    %110 = math.exp %109 : vector<4x16x16xf32>
    %111 = arith.mulf %107, %94 : vector<4x16x1xf32>
    %cst_60 = arith.constant dense<0.000000e+00> : vector<4x16xf32>
    %112 = vector.multi_reduction <add>, %110, %cst_60 [2] : vector<4x16x16xf32> to vector<4x16xf32>
    %113 = vector.shape_cast %112 : vector<4x16xf32> to vector<4x16x1xf32>
    %114 = arith.addf %111, %113 : vector<4x16x1xf32>
    %115 = vector.broadcast %107 : vector<4x16x1xf32> to vector<4x16x32xf32>
    %116 = arith.mulf %115, %95 : vector<4x16x32xf32>
    %117 = arith.truncf %110 : vector<4x16x16xf32> to vector<4x16x16xbf16>
    "tpu.trace_start"() <{level = 10 : i32, message = "hqk,hkd->hqd"}> : () -> ()
    %cst_61 = arith.constant dense<0.000000e+00> : vector<4x16x32xf32>
    %118 = tpu.matmul %117, %101, %cst_61 {dimension_numbers = #tpu.dot_dimension_numbers<[2], [1], [1], [2], [0, 0, 0, 1, 1, 2], [0], [0]>} : vector<4x16x16xbf16>, vector<4x16x32xbf16>, vector<4x16x32xf32> -> vector<4x16x32xf32>
    "tpu.trace_stop"() : () -> ()
    %119 = arith.addf %116, %118 : vector<4x16x32xf32>
    %c1_i32 = arith.constant 1 : i32
    %120 = tpu.reciprocal %114 {approx = true} : vector<4x16x1xf32> -> vector<4x16x1xf32>
    %121 = arith.mulf %114, %120 : vector<4x16x1xf32>
    %cst_62 = arith.constant 2.000000e+00 : f32
    %122 = vector.broadcast %cst_62 : f32 to vector<4x16x1xf32>
    %123 = arith.subf %122, %121 : vector<4x16x1xf32>
    %124 = arith.mulf %120, %123 : vector<4x16x1xf32>
    %125 = vector.broadcast %124 : vector<4x16x1xf32> to vector<4x16x32xf32>
    %126 = arith.mulf %119, %125 : vector<4x16x32xf32>
    %127 = vector.extract_strided_slice %126 {offsets = [0, 0, 0], sizes = [1, 16, 32], strides = [1, 1, 1]} : vector<4x16x32xf32> to vector<1x16x32xf32>
    %128 = vector.shape_cast %127 : vector<1x16x32xf32> to vector<16x32xf32>
    %c0_63 = arith.constant 0 : index
    %c0_64 = arith.constant 0 : index
    %129 = vector.load %arg18[%c0_63, %c0_64] : memref<16x128xf32, #tpu.memory_space<vmem>>, vector<16x32xf32>
    tpu.vector_store %arg18[%c0_63, %c0_64], %128 {strides = array<i32>} : memref<16x128xf32, #tpu.memory_space<vmem>>, vector<16x32xf32>,
    %130 = vector.extract_strided_slice %126 {offsets = [1, 0, 0], sizes = [1, 16, 32], strides = [1, 1, 1]} : vector<4x16x32xf32> to vector<1x16x32xf32>
    %131 = vector.shape_cast %130 : vector<1x16x32xf32> to vector<16x32xf32>
    %c0_65 = arith.constant 0 : index
    %c32 = arith.constant 32 : index
    %132 = vector.load %arg18[%c0_65, %c32] : memref<16x128xf32, #tpu.memory_space<vmem>>, vector<16x32xf32>
    tpu.vector_store %arg18[%c0_65, %c32], %131 {strides = array<i32>} : memref<16x128xf32, #tpu.memory_space<vmem>>, vector<16x32xf32>,
    %133 = vector.extract_strided_slice %126 {offsets = [2, 0, 0], sizes = [1, 16, 32], strides = [1, 1, 1]} : vector<4x16x32xf32> to vector<1x16x32xf32>
    %134 = vector.shape_cast %133 : vector<1x16x32xf32> to vector<16x32xf32>
    %c0_66 = arith.constant 0 : index
    %c64 = arith.constant 64 : index
    %135 = vector.load %arg18[%c0_66, %c64] : memref<16x128xf32, #tpu.memory_space<vmem>>, vector<16x32xf32>
    tpu.vector_store %arg18[%c0_66, %c64], %134 {strides = array<i32>} : memref<16x128xf32, #tpu.memory_space<vmem>>, vector<16x32xf32>,
    %136 = vector.extract_strided_slice %126 {offsets = [3, 0, 0], sizes = [1, 16, 32], strides = [1, 1, 1]} : vector<4x16x32xf32> to vector<1x16x32xf32>
    %137 = vector.shape_cast %136 : vector<1x16x32xf32> to vector<16x32xf32>
    %c0_67 = arith.constant 0 : index
    %c96 = arith.constant 96 : index
    %138 = vector.load %arg18[%c0_67, %c96] : memref<16x128xf32, #tpu.memory_space<vmem>>, vector<16x32xf32>
    tpu.vector_store %arg18[%c0_67, %c96], %137 {strides = array<i32>} : memref<16x128xf32, #tpu.memory_space<vmem>>, vector<16x32xf32>,
    %c0_68 = arith.constant 0 : index
    %c0_69 = arith.constant 0 : index
    %139 = vector.load %arg18[%c0_68, %c0_69] : memref<16x128xf32, #tpu.memory_space<vmem>>, vector<16x128xf32>
    %140 = arith.truncf %139 : vector<16x128xf32> to vector<16x128xbf16>
    %c0_70 = arith.constant 0 : index
    %c0_71 = arith.constant 0 : index
    %141 = vector.load %arg6[%c0_70, %c0_71] : memref<128x128xbf16, #tpu.memory_space<vmem>>, vector<128x128xbf16>
    %cst_72 = arith.constant dense<0.000000e+00> : vector<16x128xf32>
    %142 = tpu.matmul %140, %141, %cst_72 {dimension_numbers = #tpu.dot_dimension_numbers<[1], [0], [0], [1], [0, 0, 1, 1], [], []>} : vector<16x128xbf16>, vector<128x128xbf16>, vector<16x128xf32> -> vector<16x128xf32>
    %c0_73 = arith.constant 0 : index
    %c0_74 = arith.constant 0 : index
    %143 = vector.load %arg7[%c0_73, %c0_74] : memref<1x128xf32, #tpu.memory_space<vmem>>, vector<1x128xf32>
    %144 = vector.broadcast %143 : vector<1x128xf32> to vector<16x128xf32>
    %145 = arith.addf %142, %144 : vector<16x128xf32>
    %146 = arith.addf %1, %145 : vector<16x128xf32>
    %c0_75 = arith.constant 0 : index
    %c0_76 = arith.constant 0 : index
    %147 = vector.load %arg8[%c0_75, %c0_76] : memref<1x128xf32, #tpu.memory_space<vmem>>, vector<1x128xf32>
    %c0_77 = arith.constant 0 : index
    %c0_78 = arith.constant 0 : index
    %148 = vector.load %arg9[%c0_77, %c0_78] : memref<1x128xf32, #tpu.memory_space<vmem>>, vector<1x128xf32>
    %cst_79 = arith.constant dense<0.000000e+00> : vector<16xf32>
    %149 = vector.multi_reduction <add>, %146, %cst_79 [1] : vector<16x128xf32> to vector<16xf32>
    %150 = vector.shape_cast %149 : vector<16xf32> to vector<16x1xf32>
    %cst_80 = arith.constant 1.280000e+02 : f32
    %151 = vector.broadcast %cst_80 : f32 to vector<16x1xf32>
    %152 = arith.divf %150, %151 : vector<16x1xf32>
    %153 = vector.broadcast %152 : vector<16x1xf32> to vector<16x128xf32>
    %154 = arith.subf %146, %153 : vector<16x128xf32>
    %155 = arith.mulf %154, %154 : vector<16x128xf32>
    %cst_81 = arith.constant dense<0.000000e+00> : vector<16xf32>
    %156 = vector.multi_reduction <add>, %155, %cst_81 [1] : vector<16x128xf32> to vector<16xf32>
    %157 = vector.shape_cast %156 : vector<16xf32> to vector<16x1xf32>
    %cst_82 = arith.constant 1.280000e+02 : f32
    %158 = vector.broadcast %cst_82 : f32 to vector<16x1xf32>
    %159 = arith.divf %157, %158 : vector<16x1xf32>
    %160 = vector.broadcast %152 : vector<16x1xf32> to vector<16x128xf32>
    %161 = arith.subf %146, %160 : vector<16x128xf32>
    %cst_83 = arith.constant 9.99999974E-6 : f32
    %162 = vector.broadcast %cst_83 : f32 to vector<16x1xf32>
    %163 = arith.addf %159, %162 : vector<16x1xf32>
    %164 = math.rsqrt %163 : vector<16x1xf32>
    %165 = vector.broadcast %164 : vector<16x1xf32> to vector<16x128xf32>
    %166 = arith.mulf %161, %165 : vector<16x128xf32>
    %167 = vector.broadcast %147 : vector<1x128xf32> to vector<16x128xf32>
    %168 = arith.mulf %166, %167 : vector<16x128xf32>
    %169 = vector.broadcast %148 : vector<1x128xf32> to vector<16x128xf32>
    %170 = arith.addf %168, %169 : vector<16x128xf32>
    %171 = arith.truncf %170 : vector<16x128xf32> to vector<16x128xbf16>
    %cst_84 = arith.constant 0.000000e+00 : f32
    %172 = vector.broadcast %cst_84 : f32 to vector<16x128xf32>
    %c0_i32_85 = arith.constant 0 : i32
    %c256_i32 = arith.constant 256 : i32
    %173 = arith.muli %c0_i32_85, %c256_i32 : i32
    %174 = tpu.assume_multiple %173, 256 : i32
    %c0_86 = arith.constant 0 : index
    %175 = arith.index_cast %174 : i32 to index
    %176 = vector.load %arg10[%c0_86, %175] : memref<128x256xbf16, #tpu.memory_space<vmem>>, vector<128x256xbf16>
    %cst_87 = arith.constant dense<0.000000e+00> : vector<16x256xf32>
    %177 = tpu.matmul %171, %176, %cst_87 {dimension_numbers = #tpu.dot_dimension_numbers<[1], [0], [0], [1], [0, 0, 1, 1], [], []>} : vector<16x128xbf16>, vector<128x256xbf16>, vector<16x256xf32> -> vector<16x256xf32>
    %c0_88 = arith.constant 0 : index
    %178 = arith.index_cast %174 : i32 to index
    %179 = vector.load %arg11[%c0_88, %178] : memref<1x256xf32, #tpu.memory_space<vmem>>, vector<1x256xf32>
    %180 = vector.broadcast %179 : vector<1x256xf32> to vector<16x256xf32>
    %181 = arith.addf %177, %180 : vector<16x256xf32>
    %cst_89 = arith.constant 5.000000e-01 : f32
    %182 = vector.broadcast %cst_89 : f32 to vector<16x256xf32>
    %183 = arith.mulf %182, %181 : vector<16x256xf32>
    %cst_90 = arith.constant 0.707106769 : f32
    %184 = vector.broadcast %cst_90 : f32 to vector<16x256xf32>
    %185 = arith.mulf %181, %184 : vector<16x256xf32>
    %186 = math.absf %185 : vector<16x256xf32>
    %cst_91 = arith.constant 0.327591091 : f32
    %187 = vector.broadcast %cst_91 : f32 to vector<16x256xf32>
    %188 = arith.mulf %187, %186 : vector<16x256xf32>
    %cst_92 = arith.constant 1.000000e+00 : f32
    %189 = vector.broadcast %cst_92 : f32 to vector<16x256xf32>
    %190 = arith.addf %189, %188 : vector<16x256xf32>
    %cst_93 = arith.constant 1.000000e+00 : f32
    %191 = vector.broadcast %cst_93 : f32 to vector<16x256xf32>
    %192 = arith.divf %191, %190 : vector<16x256xf32>
    %cst_94 = arith.constant 1.06140542 : f32
    %193 = vector.broadcast %cst_94 : f32 to vector<16x256xf32>
    %194 = arith.mulf %193, %192 : vector<16x256xf32>
    %cst_95 = arith.constant -1.45315206 : f32
    %195 = vector.broadcast %cst_95 : f32 to vector<16x256xf32>
    %196 = arith.addf %194, %195 : vector<16x256xf32>
    %197 = arith.mulf %196, %192 : vector<16x256xf32>
    %cst_96 = arith.constant 1.42141378 : f32
    %198 = vector.broadcast %cst_96 : f32 to vector<16x256xf32>
    %199 = arith.addf %197, %198 : vector<16x256xf32>
    %200 = arith.mulf %199, %192 : vector<16x256xf32>
    %cst_97 = arith.constant -0.284496725 : f32
    %201 = vector.broadcast %cst_97 : f32 to vector<16x256xf32>
    %202 = arith.addf %200, %201 : vector<16x256xf32>
    %203 = arith.mulf %202, %192 : vector<16x256xf32>
    %cst_98 = arith.constant 0.254829586 : f32
    %204 = vector.broadcast %cst_98 : f32 to vector<16x256xf32>
    %205 = arith.addf %203, %204 : vector<16x256xf32>
    %206 = arith.mulf %205, %192 : vector<16x256xf32>
    %cst_99 = arith.constant 0.000000e+00 : f32
    %207 = vector.broadcast %cst_99 : f32 to vector<16x256xf32>
    %208 = arith.subf %207, %186 : vector<16x256xf32>
    %209 = arith.mulf %208, %186 : vector<16x256xf32>
    %210 = math.exp %209 : vector<16x256xf32>
    %211 = arith.mulf %206, %210 : vector<16x256xf32>
    %cst_100 = arith.constant 1.000000e+00 : f32
    %212 = vector.broadcast %cst_100 : f32 to vector<16x256xf32>
    %213 = arith.subf %212, %211 : vector<16x256xf32>
    %cst_101 = arith.constant 0.000000e+00 : f32
    %214 = vector.broadcast %cst_101 : f32 to vector<16x256xf32>
    %215 = arith.cmpf oge, %185, %214 : vector<16x256xf32>
    %cst_102 = arith.constant 0.000000e+00 : f32
    %216 = vector.broadcast %cst_102 : f32 to vector<16x256xf32>
    %217 = arith.subf %216, %213 : vector<16x256xf32>
    %218 = arith.select %215, %213, %217 : vector<16x256xi1>, vector<16x256xf32>
    %cst_103 = arith.constant 1.000000e+00 : f32
    %219 = vector.broadcast %cst_103 : f32 to vector<16x256xf32>
    %220 = arith.addf %219, %218 : vector<16x256xf32>
    %221 = arith.mulf %183, %220 : vector<16x256xf32>
    %222 = arith.truncf %221 : vector<16x256xf32> to vector<16x256xbf16>
    %223 = arith.index_cast %174 : i32 to index
    %c0_104 = arith.constant 0 : index
    %224 = vector.load %arg12[%223, %c0_104] : memref<256x128xbf16, #tpu.memory_space<vmem>>, vector<256x128xbf16>
    %cst_105 = arith.constant dense<0.000000e+00> : vector<16x128xf32>
    %225 = tpu.matmul %222, %224, %cst_105 {dimension_numbers = #tpu.dot_dimension_numbers<[1], [0], [0], [1], [0, 0, 1, 1], [], []>} : vector<16x256xbf16>, vector<256x128xbf16>, vector<16x128xf32> -> vector<16x128xf32>
    %226 = arith.addf %172, %225 : vector<16x128xf32>
    %c1_i32_106 = arith.constant 1 : i32
    %c0_107 = arith.constant 0 : index
    %c0_108 = arith.constant 0 : index
    %227 = vector.load %arg13[%c0_107, %c0_108] : memref<1x128xf32, #tpu.memory_space<vmem>>, vector<1x128xf32>
    %228 = vector.broadcast %227 : vector<1x128xf32> to vector<16x128xf32>
    %229 = arith.addf %226, %228 : vector<16x128xf32>
    %230 = arith.addf %146, %229 : vector<16x128xf32>
    %c0_109 = arith.constant 0 : index
    %c0_110 = arith.constant 0 : index
    %c0_111 = arith.constant 0 : index
    %231 = vector.load %arg14[%c0_109, %c0_110, %c0_111] : memref<1x16x128xf32, #tpu.memory_space<vmem>>, vector<1x16x128xf32>
    %232 = vector.shape_cast %231 : vector<1x16x128xf32> to vector<16x128xf32>
    %233 = vector.shape_cast %230 : vector<16x128xf32> to vector<1x16x128xf32>
    tpu.vector_store %arg14[%c0_109, %c0_110, %c0_111], %233 {strides = array<i32>} : memref<1x16x128xf32, #tpu.memory_space<vmem>>, vector<1x16x128xf32>,
    return
  }
  func.func @transform_0(%arg0: i32) -> (i32, i32, i32) {
    %c0_i32 = arith.constant 0 : i32
    %c0_i32_0 = arith.constant 0 : i32
    %c0_i32_1 = arith.constant 0 : i32
    return %arg0, %c0_i32, %c0_i32_0 : i32, i32, i32
  }
  func.func @transform_1(%arg0: i32) -> (i32, i32) {
    %c0_i32 = arith.constant 0 : i32
    %c0_i32_0 = arith.constant 0 : i32
    %c0_i32_1 = arith.constant 0 : i32
    return %c0_i32, %c0_i32_0 : i32, i32
  }
  func.func @transform_2(%arg0: i32) -> (i32, i32) {
    %c0_i32 = arith.constant 0 : i32
    %c0_i32_0 = arith.constant 0 : i32
    %c0_i32_1 = arith.constant 0 : i32
    return %c0_i32, %c0_i32_0 : i32, i32
  }
  func.func @transform_3(%arg0: i32) -> (i32, i32) {
    %c0_i32 = arith.constant 0 : i32
    %c0_i32_0 = arith.constant 0 : i32
    %c0_i32_1 = arith.constant 0 : i32
    return %c0_i32, %c0_i32_0 : i32, i32
  }
  func.func @transform_4(%arg0: i32) -> (i32, i32) {
    %c0_i32 = arith.constant 0 : i32
    %c0_i32_0 = arith.constant 0 : i32
    %c0_i32_1 = arith.constant 0 : i32
    return %c0_i32, %c0_i32_0 : i32, i32
  }
  func.func @transform_5(%arg0: i32) -> (i32, i32) {
    %c0_i32 = arith.constant 0 : i32
    %c0_i32_0 = arith.constant 0 : i32
    %c0_i32_1 = arith.constant 0 : i32
    return %c0_i32, %c0_i32_0 : i32, i32
  }
  func.func @transform_6(%arg0: i32) -> (i32, i32) {
    %c0_i32 = arith.constant 0 : i32
    %c0_i32_0 = arith.constant 0 : i32
    %c0_i32_1 = arith.constant 0 : i32
    return %c0_i32, %c0_i32_0 : i32, i32
  }
  func.func @transform_7(%arg0: i32) -> (i32, i32) {
    %c0_i32 = arith.constant 0 : i32
    %c0_i32_0 = arith.constant 0 : i32
    %c0_i32_1 = arith.constant 0 : i32
    return %c0_i32, %c0_i32_0 : i32, i32
  }
  func.func @transform_8(%arg0: i32) -> (i32, i32) {
    %c0_i32 = arith.constant 0 : i32
    %c0_i32_0 = arith.constant 0 : i32
    %c0_i32_1 = arith.constant 0 : i32
    return %c0_i32, %c0_i32_0 : i32, i32
  }
  func.func @transform_9(%arg0: i32) -> (i32, i32) {
    %c0_i32 = arith.constant 0 : i32
    %c0_i32_0 = arith.constant 0 : i32
    %c0_i32_1 = arith.constant 0 : i32
    return %c0_i32, %c0_i32_0 : i32, i32
  }
  func.func @transform_10(%arg0: i32) -> (i32, i32) {
    %c0_i32 = arith.constant 0 : i32
    %c0_i32_0 = arith.constant 0 : i32
    %c0_i32_1 = arith.constant 0 : i32
    return %c0_i32, %c0_i32_0 : i32, i32
  }
  func.func @transform_11(%arg0: i32) -> (i32, i32) {
    %c0_i32 = arith.constant 0 : i32
    %c0_i32_0 = arith.constant 0 : i32
    %c0_i32_1 = arith.constant 0 : i32
    return %c0_i32, %c0_i32_0 : i32, i32
  }
  func.func @transform_12(%arg0: i32) -> (i32, i32) {
    %c0_i32 = arith.constant 0 : i32
    %c0_i32_0 = arith.constant 0 : i32
    %c0_i32_1 = arith.constant 0 : i32
    return %c0_i32, %c0_i32_0 : i32, i32
  }
  func.func @transform_13(%arg0: i32) -> (i32, i32, i32) {
    %c0_i32 = arith.constant 0 : i32
    %c0_i32_0 = arith.constant 0 : i32
    %c0_i32_1 = arith.constant 0 : i32
    return %arg0, %c0_i32, %c0_i32_0 : i32, i32, i32
  }
}

</mosaic_0001>

<llo_original>
// kernel: attention_block.1
$region0: #{attention_block.1}
  #allocation0 [shape = 'u32[]', space=smem, size = 0x4, offset = 0x4, fixed_abs, tag = 'smem constant byte address 0x4 - core index']
  #allocation1 [shape = 'u32[72,128]{1,0:T(1,128)}', space=vmem, size = 0x9000, scoped, tag = 'internal scratch']
  #allocation2 [shape = 'bf16[4,16,32]{2,1,0:T(8,128)(2,1)}', space=vmem, size = 0x4000, scoped, tag = 'scratch operand']
  #allocation3 [shape = 'bf16[4,16,32]{2,1,0:T(8,128)(2,1)}', space=vmem, size = 0x4000, scoped, tag = 'scratch operand']
  #allocation4 [shape = 'bf16[4,16,32]{2,1,0:T(8,128)(2,1)}', space=vmem, size = 0x4000, scoped, tag = 'scratch operand']
  #allocation5 [shape = 'f32[16,128]{1,0:T(8,128)}', space=vmem, size = 0x2000, scoped, tag = 'scratch operand']
  %s0 = inlined_call_operand.vmem [shape: f32[2,16,128], index: 0, kind: input, shape index: {}]
  %s1 = inlined_call_operand.vmem [shape: f32[1,128], index: 1, kind: input, shape index: {}]
  %s2 = inlined_call_operand.vmem [shape: f32[1,128], index: 2, kind: input, shape index: {}]
  %s3 = inlined_call_operand.hbm [shape: bf16[128,384], index: 3, kind: input, shape index: {}]
  %s4 = inlined_call_operand.vmem [shape: f32[1,384], index: 4, kind: input, shape index: {}]
  %s5 = inlined_call_operand.vmem [shape: bf16[128,128], index: 5, kind: input, shape index: {}]
  %s6 = inlined_call_operand.vmem [shape: f32[1,128], index: 6, kind: input, shape index: {}]
  %s7 = inlined_call_operand.vmem [shape: f32[1,128], index: 7, kind: input, shape index: {}]
  %s8 = inlined_call_operand.vmem [shape: f32[1,128], index: 8, kind: input, shape index: {}]
  %s9 = inlined_call_operand.hbm [shape: bf16[128,256], index: 9, kind: input, shape index: {}]
  %s10 = inlined_call_operand.vmem [shape: f32[1,256], index: 10, kind: input, shape index: {}]
  %s11 = inlined_call_operand.hbm [shape: bf16[256,128], index: 11, kind: input, shape index: {}]
  %s12 = inlined_call_operand.hbm [shape: f32[1,128], index: 12, kind: input, shape index: {}]
  %s13 = inlined_call_operand.vmem [shape: f32[2,16,128], index: 13, kind: output, shape index: {}]
  %s14 = sld [smem:[#allocation0]]
  $region101: #{attention_block.1} parent=0
    _
  %s16 = ssub.s32 1, %s14
  %s17 = scalar_select 0, %s16, %s14
  $region1: #{attention_block.1} parent=0
    #allocation6 [shape = 'u8[98304]{0}', space=vmem, size = 0x18000, scoped, tag = 'input window, operand 3, single buffered']
    #allocation7 [shape = 's32[2]{0}', space=sflag, size = 0x8, scoped, tag = 'scoped memory for attention_block.1']
    #allocation8 [shape = 'u8[65536]{0}', space=vmem, size = 0x10000, scoped, tag = 'input window, operand 9, single buffered']
    #allocation9 [shape = 's32[1]{0}', space=sflag, size = 0x4, scoped, tag = 'scoped memory for attention_block.1']
    #allocation10 [shape = 'u8[65536]{0}', space=vmem, size = 0x10000, scoped, tag = 'input window, operand 11, single buffered']
    #allocation11 [shape = 'u8[512]{0}', space=vmem, size = 0x400, scoped, tag = 'input window, operand 12, single buffered']
    #allocation12 [shape = 's32[1]{0}', space=sflag, size = 0x4, scoped, tag = 'scoped memory for attention_block.1']
    %18 = vsyncpa [#allocation7], 0
    %19 = vsyncpa [#allocation9], 0
    %20 = vsyncpa [#allocation12], 0
    loop: start=0, step=1, limit=4
    $region2: #{attention_block.1} parent=1 // loop_pre_header
      _
    $region3: #{attention_block.1} parent=1 // loop_header
      %s22 = sphi 0, %s26
      %p23 = scmp.ge.s32.totalorder %s22, 4
      %s32 = sphi 0, %s34
      %s35 = sphi 0, %s32
      %s36 = sphi 0, %s35
      %s52 = sphi 0, %s36
      %s56 = sphi 0, %s56
      %s58 = sphi 0, %s56
      %s59 = sphi 0, %s58
      %s73 = sphi 0, %s59
      %s77 = sphi 0, %s77
      %s79 = sphi 0, %s77
      %s80 = sphi 0, %s79
      %s94 = sphi 0, %s80
      %s98 = sphi 0, %s98
      %s100 = sphi 0, %s98
      %s101 = sphi 0, %s100
      %s115 = sphi 0, %s101
      %s119 = sphi 0, %s119
      %s121 = sphi 0, %s119
      %s122 = sphi 0, %s121
      %s136 = sphi 0, %s122
      %s140 = sphi 0, %s140
      %s142 = sphi 0, %s140
      %s143 = sphi 0, %s142
      %s157 = sphi 0, %s143
      %s161 = sphi 0, %s161
      %s163 = sphi 0, %s161
      %s164 = sphi 0, %s163
      %s178 = sphi 0, %s164
      %s182 = sphi 0, %s182
      %s184 = sphi 0, %s182
      %s185 = sphi 0, %s184
      %s199 = sphi 0, %s185
      %s203 = sphi 0, %s203
      %s205 = sphi 0, %s203
      %s206 = sphi 0, %s205
      %s220 = sphi 0, %s206
      %s224 = sphi 0, %s224
      %s226 = sphi 0, %s224
      %s227 = sphi 0, %s226
      %s241 = sphi 0, %s227
      %s245 = sphi 0, %s245
      %s247 = sphi 0, %s245
      %s248 = sphi 0, %s247
      %s262 = sphi 0, %s248
      %s266 = sphi 0, %s266
      %s268 = sphi 0, %s266
      %s269 = sphi 0, %s268
      %s283 = sphi 0, %s269
      %s287 = sphi 0, %s287
      %s289 = sphi 0, %s287
      %s290 = sphi 0, %s289
      %s304 = sphi 0, %s290
      %s310 = sphi 0, %s312
      %s313 = sphi 0, %s310
      %s314 = sphi 0, %s313
      %s330 = sphi 0, %s314
    $region4: #{attention_block.1} parent=1 // loop_header_branch
      %25 = sbr.rel (%p23) target = $region8
    $region5: #{attention_block.1} parent=1 // loop_body
      %s27 = ssub.s32 %s22, 1
      %s28 = ssub.s32 %s22, 2
      %s29 = sadd.s32 %s22, 1
      %s30 = ssub.s32 %s22, %s29
      %p31 = scmp.eq.s32.totalorder %s30, 0
      %s33 = sadd.s32 %s32, 1
      %s34 = scalar_select %p31, %s32, %s33
      %p37 = pneg %p31
      %p38 = scmp.eq.s32.totalorder %s22, 1
      %p39 = por %p37, %p38
      %p40 = scmp.ne.s32.totalorder %s32, %s35
      %p41 = scmp.eq.s32.totalorder %s22, 0
      %p42 = por %p40, %p41
      %p43 = scmp.ne.s32.totalorder %s32, %s35
      %p44 = scmp.eq.s32.totalorder %s27, 1
      %p45 = por %p43, %p44
      %p46 = scmp.ne.s32.totalorder %s35, %s36
      %p47 = scmp.eq.s32.totalorder %s27, 0
      %p48 = por %p46, %p47
      %p49 = scmp.ne.s32.totalorder %s35, %s36
      %p50 = scmp.eq.s32.totalorder %s28, 1
      %p51 = por %p49, %p50
      %p53 = scmp.ne.s32.totalorder %s36, %s52
      %p54 = scmp.eq.s32.totalorder %s28, 0
      %p55 = por %p53, %p54
      %s57 = sadd.s32 %s56, 1
      %p60 = scmp.eq.s32.totalorder %s22, 1
      %p61 = scmp.ne.s32.totalorder %s56, %s58
      %p62 = scmp.eq.s32.totalorder %s22, 0
      %p63 = por %p61, %p62
      %p64 = scmp.ne.s32.totalorder %s56, %s58
      %p65 = scmp.eq.s32.totalorder %s27, 1
      %p66 = por %p64, %p65
      %p67 = scmp.ne.s32.totalorder %s58, %s59
      %p68 = scmp.eq.s32.totalorder %s27, 0
      %p69 = por %p67, %p68
      %p70 = scmp.ne.s32.totalorder %s58, %s59
      %p71 = scmp.eq.s32.totalorder %s28, 1
      %p72 = por %p70, %p71
      %p74 = scmp.ne.s32.totalorder %s59, %s73
      %p75 = scmp.eq.s32.totalorder %s28, 0
      %p76 = por %p74, %p75
      %s78 = sadd.s32 %s77, 1
      %p81 = scmp.eq.s32.totalorder %s22, 1
      %p82 = scmp.ne.s32.totalorder %s77, %s79
      %p83 = scmp.eq.s32.totalorder %s22, 0
      %p84 = por %p82, %p83
      %p85 = scmp.ne.s32.totalorder %s77, %s79
      %p86 = scmp.eq.s32.totalorder %s27, 1
      %p87 = por %p85, %p86
      %p88 = scmp.ne.s32.totalorder %s79, %s80
      %p89 = scmp.eq.s32.totalorder %s27, 0
      %p90 = por %p88, %p89
      %p91 = scmp.ne.s32.totalorder %s79, %s80
      %p92 = scmp.eq.s32.totalorder %s28, 1
      %p93 = por %p91, %p92
      %p95 = scmp.ne.s32.totalorder %s80, %s94
      %p96 = scmp.eq.s32.totalorder %s28, 0
      %p97 = por %p95, %p96
      %s99 = sadd.s32 %s98, 1
      %p102 = scmp.eq.s32.totalorder %s22, 1
      %p103 = scmp.ne.s32.totalorder %s98, %s100
      %p104 = scmp.eq.s32.totalorder %s22, 0
      %p105 = por %p103, %p104
      %p106 = scmp.ne.s32.totalorder %s98, %s100
      %p107 = scmp.eq.s32.totalorder %s27, 1
      %p108 = por %p106, %p107
      %p109 = scmp.ne.s32.totalorder %s100, %s101
      %p110 = scmp.eq.s32.totalorder %s27, 0
      %p111 = por %p109, %p110
      %p112 = scmp.ne.s32.totalorder %s100, %s101
      %p113 = scmp.eq.s32.totalorder %s28, 1
      %p114 = por %p112, %p113
      %p116 = scmp.ne.s32.totalorder %s101, %s115
      %p117 = scmp.eq.s32.totalorder %s28, 0
      %p118 = por %p116, %p117
      %s120 = sadd.s32 %s119, 1
      %p123 = scmp.eq.s32.totalorder %s22, 1
      %p124 = scmp.ne.s32.totalorder %s119, %s121
      %p125 = scmp.eq.s32.totalorder %s22, 0
      %p126 = por %p124, %p125
      %p127 = scmp.ne.s32.totalorder %s119, %s121
      %p128 = scmp.eq.s32.totalorder %s27, 1
      %p129 = por %p127, %p128
      %p130 = scmp.ne.s32.totalorder %s121, %s122
      %p131 = scmp.eq.s32.totalorder %s27, 0
      %p132 = por %p130, %p131
      %p133 = scmp.ne.s32.totalorder %s121, %s122
      %p134 = scmp.eq.s32.totalorder %s28, 1
      %p135 = por %p133, %p134
      %p137 = scmp.ne.s32.totalorder %s122, %s136
      %p138 = scmp.eq.s32.totalorder %s28, 0
      %p139 = por %p137, %p138
      %s141 = sadd.s32 %s140, 1
      %p144 = scmp.eq.s32.totalorder %s22, 1
      %p145 = scmp.ne.s32.totalorder %s140, %s142
      %p146 = scmp.eq.s32.totalorder %s22, 0
      %p147 = por %p145, %p146
      %p148 = scmp.ne.s32.totalorder %s140, %s142
      %p149 = scmp.eq.s32.totalorder %s27, 1
      %p150 = por %p148, %p149
      %p151 = scmp.ne.s32.totalorder %s142, %s143
      %p152 = scmp.eq.s32.totalorder %s27, 0
      %p153 = por %p151, %p152
      %p154 = scmp.ne.s32.totalorder %s142, %s143
      %p155 = scmp.eq.s32.totalorder %s28, 1
      %p156 = por %p154, %p155
      %p158 = scmp.ne.s32.totalorder %s143, %s157
      %p159 = scmp.eq.s32.totalorder %s28, 0
      %p160 = por %p158, %p159
      %s162 = sadd.s32 %s161, 1
      %p165 = scmp.eq.s32.totalorder %s22, 1
      %p166 = scmp.ne.s32.totalorder %s161, %s163
      %p167 = scmp.eq.s32.totalorder %s22, 0
      %p168 = por %p166, %p167
      %p169 = scmp.ne.s32.totalorder %s161, %s163
      %p170 = scmp.eq.s32.totalorder %s27, 1
      %p171 = por %p169, %p170
      %p172 = scmp.ne.s32.totalorder %s163, %s164
      %p173 = scmp.eq.s32.totalorder %s27, 0
      %p174 = por %p172, %p173
      %p175 = scmp.ne.s32.totalorder %s163, %s164
      %p176 = scmp.eq.s32.totalorder %s28, 1
      %p177 = por %p175, %p176
      %p179 = scmp.ne.s32.totalorder %s164, %s178
      %p180 = scmp.eq.s32.totalorder %s28, 0
      %p181 = por %p179, %p180
      %s183 = sadd.s32 %s182, 1
      %p186 = scmp.eq.s32.totalorder %s22, 1
      %p187 = scmp.ne.s32.totalorder %s182, %s184
      %p188 = scmp.eq.s32.totalorder %s22, 0
      %p189 = por %p187, %p188
      %p190 = scmp.ne.s32.totalorder %s182, %s184
      %p191 = scmp.eq.s32.totalorder %s27, 1
      %p192 = por %p190, %p191
      %p193 = scmp.ne.s32.totalorder %s184, %s185
      %p194 = scmp.eq.s32.totalorder %s27, 0
      %p195 = por %p193, %p194
      %p196 = scmp.ne.s32.totalorder %s184, %s185
      %p197 = scmp.eq.s32.totalorder %s28, 1
      %p198 = por %p196, %p197
      %p200 = scmp.ne.s32.totalorder %s185, %s199
      %p201 = scmp.eq.s32.totalorder %s28, 0
      %p202 = por %p200, %p201
      %s204 = sadd.s32 %s203, 1
      %p207 = scmp.eq.s32.totalorder %s22, 1
      %p208 = scmp.ne.s32.totalorder %s203, %s205
      %p209 = scmp.eq.s32.totalorder %s22, 0
      %p210 = por %p208, %p209
      %p211 = scmp.ne.s32.totalorder %s203, %s205
      %p212 = scmp.eq.s32.totalorder %s27, 1
      %p213 = por %p211, %p212
      %p214 = scmp.ne.s32.totalorder %s205, %s206
      %p215 = scmp.eq.s32.totalorder %s27, 0
      %p216 = por %p214, %p215
      %p217 = scmp.ne.s32.totalorder %s205, %s206
      %p218 = scmp.eq.s32.totalorder %s28, 1
      %p219 = por %p217, %p218
      %p221 = scmp.ne.s32.totalorder %s206, %s220
      %p222 = scmp.eq.s32.totalorder %s28, 0
      %p223 = por %p221, %p222
      %s225 = sadd.s32 %s224, 1
      %p228 = scmp.eq.s32.totalorder %s22, 1
      %p229 = scmp.ne.s32.totalorder %s224, %s226
      %p230 = scmp.eq.s32.totalorder %s22, 0
      %p231 = por %p229, %p230
      %p232 = scmp.ne.s32.totalorder %s224, %s226
      %p233 = scmp.eq.s32.totalorder %s27, 1
      %p234 = por %p232, %p233
      %p235 = scmp.ne.s32.totalorder %s226, %s227
      %p236 = scmp.eq.s32.totalorder %s27, 0
      %p237 = por %p235, %p236
      %p238 = scmp.ne.s32.totalorder %s226, %s227
      %p239 = scmp.eq.s32.totalorder %s28, 1
      %p240 = por %p238, %p239
      %p242 = scmp.ne.s32.totalorder %s227, %s241
      %p243 = scmp.eq.s32.totalorder %s28, 0
      %p244 = por %p242, %p243
      %s246 = sadd.s32 %s245, 1
      %p249 = scmp.eq.s32.totalorder %s22, 1
      %p250 = scmp.ne.s32.totalorder %s245, %s247
      %p251 = scmp.eq.s32.totalorder %s22, 0
      %p252 = por %p250, %p251
      %p253 = scmp.ne.s32.totalorder %s245, %s247
      %p254 = scmp.eq.s32.totalorder %s27, 1
      %p255 = por %p253, %p254
      %p256 = scmp.ne.s32.totalorder %s247, %s248
      %p257 = scmp.eq.s32.totalorder %s27, 0
      %p258 = por %p256, %p257
      %p259 = scmp.ne.s32.totalorder %s247, %s248
      %p260 = scmp.eq.s32.totalorder %s28, 1
      %p261 = por %p259, %p260
      %p263 = scmp.ne.s32.totalorder %s248, %s262
      %p264 = scmp.eq.s32.totalorder %s28, 0
      %p265 = por %p263, %p264
      %s267 = sadd.s32 %s266, 1
      %p270 = scmp.eq.s32.totalorder %s22, 1
      %p271 = scmp.ne.s32.totalorder %s266, %s268
      %p272 = scmp.eq.s32.totalorder %s22, 0
      %p273 = por %p271, %p272
      %p274 = scmp.ne.s32.totalorder %s266, %s268
      %p275 = scmp.eq.s32.totalorder %s27, 1
      %p276 = por %p274, %p275
      %p277 = scmp.ne.s32.totalorder %s268, %s269
      %p278 = scmp.eq.s32.totalorder %s27, 0
      %p279 = por %p277, %p278
      %p280 = scmp.ne.s32.totalorder %s268, %s269
      %p281 = scmp.eq.s32.totalorder %s28, 1
      %p282 = por %p280, %p281
      %p284 = scmp.ne.s32.totalorder %s269, %s283
      %p285 = scmp.eq.s32.totalorder %s28, 0
      %p286 = por %p284, %p285
      %s288 = sadd.s32 %s287, 1
      %p291 = scmp.eq.s32.totalorder %s22, 1
      %p292 = scmp.ne.s32.totalorder %s287, %s289
      %p293 = scmp.eq.s32.totalorder %s22, 0
      %p294 = por %p292, %p293
      %p295 = scmp.ne.s32.totalorder %s287, %s289
      %p296 = scmp.eq.s32.totalorder %s27, 1
      %p297 = por %p295, %p296
      %p298 = scmp.ne.s32.totalorder %s289, %s290
      %p299 = scmp.eq.s32.totalorder %s27, 0
      %p300 = por %p298, %p299
      %p301 = scmp.ne.s32.totalorder %s289, %s290
      %p302 = scmp.eq.s32.totalorder %s28, 1
      %p303 = por %p301, %p302
      %p305 = scmp.ne.s32.totalorder %s290, %s304
      %p306 = scmp.eq.s32.totalorder %s28, 0
      %p307 = por %p305, %p306
      %s308 = ssub.s32 %s22, %s29
      %p309 = scmp.eq.s32.totalorder %s308, 0
      %s311 = sadd.s32 %s310, 1
      %s312 = scalar_select %p309, %s310, %s311
      %p315 = pneg %p309
      %p316 = scmp.eq.s32.totalorder %s22, 1
      %p317 = por %p315, %p316
      %p318 = scmp.ne.s32.totalorder %s310, %s313
      %p319 = scmp.eq.s32.totalorder %s22, 0
      %p320 = por %p318, %p319
      %p321 = scmp.ne.s32.totalorder %s310, %s313
      %p322 = scmp.eq.s32.totalorder %s27, 1
      %p323 = por %p321, %p322
      %p324 = scmp.ne.s32.totalorder %s313, %s314
      %p325 = scmp.eq.s32.totalorder %s27, 0
      %p326 = por %p324, %p325
      %p327 = scmp.ne.s32.totalorder %s313, %s314
      %p328 = scmp.eq.s32.totalorder %s28, 1
      %p329 = por %p327, %p328
      %p331 = scmp.ne.s32.totalorder %s314, %s330
      %p332 = scmp.eq.s32.totalorder %s28, 0
      %p333 = por %p331, %p332
      %p334 = scmp.le.s32.totalorder 1, %s22
      %p335 = scmp.lt.s32.totalorder %s22, 3
      %p336 = pnand %p334, %p335
      %p337 = pneg %p336
      // Predicated region
      $region9: #{attention_block.1} parent=5 // pred_check
        _
      $region10: #{attention_block.1} parent=5 // pred_check_branch
        %339 = sbr.rel (%p336) target = $region12
      $region11: #{attention_block.1} parent=5 // pred_region
        %s340 = ssub.s32 %s22, 1
        // Predicated region
        $region13: #{attention_block.1} parent=11 // pred_check
          %p341 = pneg %p69
        $region14: #{attention_block.1} parent=11 // pred_check_branch
          %343 = sbr.rel (%p341) target = $region16
        $region15: #{attention_block.1} parent=11 // pred_region
          _
        $region16: #{attention_block.1} parent=11 // pred_fallthru
          _
        // Predicated region
        $region17: #{attention_block.1} parent=11 // pred_check
          %p344 = pneg %p90
        $region18: #{attention_block.1} parent=11 // pred_check_branch
          %346 = sbr.rel (%p344) target = $region20
        $region19: #{attention_block.1} parent=11 // pred_region
          _
        $region20: #{attention_block.1} parent=11 // pred_fallthru
          _
        // Predicated region
        $region21: #{attention_block.1} parent=11 // pred_check
          %p347 = pneg %p111
        $region22: #{attention_block.1} parent=11 // pred_check_branch
          %349 = sbr.rel (%p347) target = $region24
        $region23: #{attention_block.1} parent=11 // pred_region
          %351 = vsyncadd [#allocation7], 0
          %s352 = sshll.u32 %s3, 4
          %s353 = int_to_ptr.hbm [resolvable:$true] %s352
          %s354 = sshll.u32 [#allocation6], 4
          %s355 = int_to_ptr.vmem [resolvable:$true] %s354
          %360 = dma.hbm_to_vmem [thread:$0]  %s353, 3072, %s355, [#allocation7], 192, 192, 12
        $region24: #{attention_block.1} parent=11 // pred_fallthru
          _
        // Predicated region
        $region25: #{attention_block.1} parent=11 // pred_check
          %p361 = pneg %p132
        $region26: #{attention_block.1} parent=11 // pred_check_branch
          %363 = sbr.rel (%p361) target = $region28
        $region27: #{attention_block.1} parent=11 // pred_region
          _
        $region28: #{attention_block.1} parent=11 // pred_fallthru
          _
        // Predicated region
        $region29: #{attention_block.1} parent=11 // pred_check
          %p364 = pneg %p153
        $region30: #{attention_block.1} parent=11 // pred_check_branch
          %366 = sbr.rel (%p364) target = $region32
        $region31: #{attention_block.1} parent=11 // pred_region
          _
        $region32: #{attention_block.1} parent=11 // pred_fallthru
          _
        // Predicated region
        $region33: #{attention_block.1} parent=11 // pred_check
          %p367 = pneg %p174
        $region34: #{attention_block.1} parent=11 // pred_check_branch
          %369 = sbr.rel (%p367) target = $region36
        $region35: #{attention_block.1} parent=11 // pred_region
          _
        $region36: #{attention_block.1} parent=11 // pred_fallthru
          _
        // Predicated region
        $region37: #{attention_block.1} parent=11 // pred_check
          %p370 = pneg %p195
        $region38: #{attention_block.1} parent=11 // pred_check_branch
          %372 = sbr.rel (%p370) target = $region40
        $region39: #{attention_block.1} parent=11 // pred_region
          _
        $region40: #{attention_block.1} parent=11 // pred_fallthru
          _
        // Predicated region
        $region41: #{attention_block.1} parent=11 // pred_check
          %p373 = pneg %p216
        $region42: #{attention_block.1} parent=11 // pred_check_branch
          %375 = sbr.rel (%p373) target = $region44
        $region43: #{attention_block.1} parent=11 // pred_region
          _
        $region44: #{attention_block.1} parent=11 // pred_fallthru
          _
        // Predicated region
        $region45: #{attention_block.1} parent=11 // pred_check
          %p376 = pneg %p237
        $region46: #{attention_block.1} parent=11 // pred_check_branch
          %378 = sbr.rel (%p376) target = $region48
        $region47: #{attention_block.1} parent=11 // pred_region
          %380 = vsyncadd [#allocation9], 0
          %s381 = sshll.u32 %s9, 4
          %s382 = int_to_ptr.hbm [resolvable:$true] %s381
          %s383 = sshll.u32 [#allocation8], 4
          %s384 = int_to_ptr.vmem [resolvable:$true] %s383
          %389 = dma.hbm_to_vmem [thread:$0]  %s382, 2048, %s384, [#allocation9], 128, 128, 8
        $region48: #{attention_block.1} parent=11 // pred_fallthru
          _
        // Predicated region
        $region49: #{attention_block.1} parent=11 // pred_check
          %p390 = pneg %p258
        $region50: #{attention_block.1} parent=11 // pred_check_branch
          %392 = sbr.rel (%p390) target = $region52
        $region51: #{attention_block.1} parent=11 // pred_region
          _
        $region52: #{attention_block.1} parent=11 // pred_fallthru
          _
        // Predicated region
        $region53: #{attention_block.1} parent=11 // pred_check
          %p393 = pneg %p279
        $region54: #{attention_block.1} parent=11 // pred_check_branch
          %395 = sbr.rel (%p393) target = $region56
        $region55: #{attention_block.1} parent=11 // pred_region
          %397 = vsyncadd [#allocation9], 0
          %s398 = sshll.u32 %s11, 4
          %s399 = int_to_ptr.hbm [resolvable:$true] %s398
          %s400 = sshll.u32 [#allocation10], 4
          %s401 = int_to_ptr.vmem [resolvable:$true] %s400
          %406 = dma.hbm_to_vmem [thread:$0]  %s399, 2048, %s401, [#allocation9], 64, 64, 4
        $region56: #{attention_block.1} parent=11 // pred_fallthru
          _
        // Predicated region
        $region57: #{attention_block.1} parent=11 // pred_check
          %p407 = pneg %p300
        $region58: #{attention_block.1} parent=11 // pred_check_branch
          %409 = sbr.rel (%p407) target = $region60
        $region59: #{attention_block.1} parent=11 // pred_region
          %411 = vsyncadd [#allocation12], 0
          %s413 = sshll.u32 %s12, 4
          %s414 = int_to_ptr.hbm [resolvable:$true] %s413
          %s415 = sshll.u32 [#allocation11], 4
          %s416 = int_to_ptr.vmem [resolvable:$true] %s415
          %418 = dma.hbm_to_vmem [thread:$0]  %s414, 16, %s416, [#allocation12]
        $region60: #{attention_block.1} parent=11 // pred_fallthru
          _
      $region12: #{attention_block.1} parent=5 // pred_fallthru
        _
      %p419 = scmp.lt.s32.totalorder %s22, 2
      // Predicated region
      $region61: #{attention_block.1} parent=5 // pred_check
        %p420 = pneg %p419
      $region62: #{attention_block.1} parent=5 // pred_check_branch
        %422 = sbr.rel (%p420) target = $region64
      $region63: #{attention_block.1} parent=5 // pred_region
        // Predicated region
        $region65: #{attention_block.1} parent=63 // pred_check
          %p423 = pneg %p42
        $region66: #{attention_block.1} parent=63 // pred_check_branch
          %425 = sbr.rel (%p423) target = $region68
        $region67: #{attention_block.1} parent=63 // pred_region
          %p426 = scmp.lt.s32.totalorder %s22, 1
          %s427 = scalar_select %p426, %s22, 1
          %s428 = smul.addr %s427, 2
          %s429 = smul.addr %s428, 8
          %s430 = scalar_lea.vmem %s0, %s429
        $region68: #{attention_block.1} parent=63 // pred_fallthru
          _
      $region64: #{attention_block.1} parent=5 // pred_fallthru
        _
      %p431 = scmp.le.s32.totalorder 1, %s22
      %p432 = scmp.lt.s32.totalorder %s22, 3
      %p433 = pnand %p431, %p432
      %p434 = pneg %p433
      // Predicated region
      $region69: #{attention_block.1} parent=5 // pred_check
        _
      $region70: #{attention_block.1} parent=5 // pred_check_branch
        %436 = sbr.rel (%p433) target = $region72
      $region71: #{attention_block.1} parent=5 // pred_region
        %s437 = ssub.s32 %s22, 1
        // Predicated region
        $region73: #{attention_block.1} parent=71 // pred_check
          %p438 = pneg %p111
        $region74: #{attention_block.1} parent=71 // pred_check_branch
          %440 = sbr.rel (%p438) target = $region76
        $region75: #{attention_block.1} parent=71 // pred_region
          %442 = dma.done [#allocation7], 3072
        $region76: #{attention_block.1} parent=71 // pred_fallthru
          _
        // Predicated region
        $region77: #{attention_block.1} parent=71 // pred_check
          %p443 = pneg %p237
        $region78: #{attention_block.1} parent=71 // pred_check_branch
          %445 = sbr.rel (%p443) target = $region80
        $region79: #{attention_block.1} parent=71 // pred_region
          %447 = dma.done [#allocation9], 2048
        $region80: #{attention_block.1} parent=71 // pred_fallthru
          _
        // Predicated region
        $region81: #{attention_block.1} parent=71 // pred_check
          %p448 = pneg %p279
        $region82: #{attention_block.1} parent=71 // pred_check_branch
          %450 = sbr.rel (%p448) target = $region84
        $region83: #{attention_block.1} parent=71 // pred_region
          %452 = dma.done [#allocation9], 2048
        $region84: #{attention_block.1} parent=71 // pred_fallthru
          _
        // Predicated region
        $region85: #{attention_block.1} parent=71 // pred_check
          %p453 = pneg %p300
        $region86: #{attention_block.1} parent=71 // pred_check_branch
          %455 = sbr.rel (%p453) target = $region88
        $region87: #{attention_block.1} parent=71 // pred_region
          %457 = dma.done [#allocation12], 16
        $region88: #{attention_block.1} parent=71 // pred_fallthru
          _
        %p458 = scmp.lt.s32.totalorder %s27, 1
        %s459 = scalar_select %p458, %s27, 1
        %s460 = smul.addr %s459, 2
        %s461 = smul.addr %s460, 8
        %s462 = scalar_lea.vmem %s0, %s461
        %p463 = pneg %p48
        %p464 = pneg %p45
        %p465 = pneg %p69
        %p466 = pneg %p66
        %p467 = pneg %p90
        %p468 = pneg %p87
        %p469 = pneg %p111
        %p470 = pneg %p108
        %p471 = pneg %p132
        %p472 = pneg %p129
        %p473 = pneg %p153
        %p474 = pneg %p150
        %p475 = pneg %p174
        %p476 = pneg %p171
        %p477 = pneg %p195
        %p478 = pneg %p192
        %p479 = pneg %p216
        %p480 = pneg %p213
        %p481 = pneg %p237
        %p482 = pneg %p234
        %p483 = pneg %p258
        %p484 = pneg %p255
        %p485 = pneg %p279
        %p486 = pneg %p276
        %p487 = pneg %p300
        %p488 = pneg %p297
        %p489 = pneg %p326
        %p490 = pneg %p323
        %p491 = scmp.lt.s32.totalorder %s27, 1
        %s492 = scalar_select %p491, %s27, 1
        %s493 = smul.addr %s492, 2
        %s494 = smul.addr %s493, 8
        %s495 = scalar_lea.vmem %s13, %s494
        %p496 = scmp.lt.s32.totalorder %s27, 1
        %s497 = scalar_select %p496, %s27, 1
        %s498 = smul.addr %s497, 2
        %s499 = smul.addr %s498, 8
        %s500 = scalar_lea.vmem %s0, %s499
        %p501 = scmp.lt.s32.totalorder %s27, 1
        %s502 = scalar_select %p501, %s27, 1
        %s503 = smul.addr %s502, 2
        %s504 = smul.addr %s503, 8
        %s505 = scalar_lea.vmem %s13, %s504
        %v507 = vld [vmem:[%s500] sm:$0xff]
        %v508 = vld [vmem:[%s500 + $0x8] sm:$0xff]
        %v509 = vld [vmem:[%s1] sm:$0x1]
        %v510 = vld [vmem:[%s2] sm:$0x1]
        %511 = vadd.xlane.f32.xlu0 %v507
        %v512 = vpop.xlane.xlu0 %511
        %513 = vadd.xlane.f32.xlu0 %v508
        %v514 = vpop.xlane.xlu0 %513
        %v515 = vrcp.pop 128.0
        %v516 = vmul.f32 128.0, %v515
        %v517 = vsub.f32 1.0, %v516
        %v518 = vmul.f32 %v515, %v517
        %v519 = vadd.f32 %v515, %v518
        %vm520 = vweird.f32 %v515
        %v521 = vsel %vm520, %v515, %v519
        %v522 = vmul.f32 %v512, %v521
        %v523 = vmul.f32 %v514, %v521
        %v524 = vsub.f32 %v507, %v522
        %v525 = vsub.f32 %v508, %v523
        %v526 = vmul.f32 %v524, %v524
        %v527 = vmul.f32 %v525, %v525
        %528 = vadd.xlane.f32.xlu0 %v526
        %v529 = vpop.xlane.xlu0 %528
        %530 = vadd.xlane.f32.xlu0 %v527
        %v531 = vpop.xlane.xlu0 %530
        %v532 = vmul.f32 %v529, %v521
        %v533 = vmul.f32 %v531, %v521
        %v534 = vadd.f32 %v532, 1e-05
        %v535 = vadd.f32 %v533, 1e-05
        %v536 = vrsqrt.pop %v534
        %v537 = vmul.f32 %v536, %v534
        %v538 = vmul.f32 %v537, %v536
        %v539 = vmul.f32 0.5, %v538
        %v540 = vsub.f32 1.5, %v539
        %v541 = vmul.f32 %v536, %v540
        %vm542 = vweird.f32 %v534
        %vm543 = vweird.f32 %v536
        %vm544 = vmor %vm542, %vm543
        %v545 = vsel %vm544, %v536, %v541
        %v546 = vrsqrt.pop %v535
        %v547 = vmul.f32 %v546, %v535
        %v548 = vmul.f32 %v547, %v546
        %v549 = vmul.f32 0.5, %v548
        %v550 = vsub.f32 1.5, %v549
        %v551 = vmul.f32 %v546, %v550
        %vm552 = vweird.f32 %v535
        %vm553 = vweird.f32 %v546
        %vm554 = vmor %vm552, %vm553
        %v555 = vsel %vm554, %v546, %v551
        %v556 = vmul.f32 %v524, %v545
        %v557 = vmul.f32 %v525, %v555
        %v559 = vperm.slane %v509, 0
        %v561 = vmul.f32 %v556, %v559
        %v562 = vmul.f32 %v557, %v559
        %v564 = vperm.slane %v510, 0
        %v566 = vadd.f32 %v561, %v564
        %v567 = vadd.f32 %v562, %v564
        %v568 = vpack.c.bf16 %v567, %v566
        %v569 = vld [vmem:[#allocation6] sm:$0xff]
        %v570 = vld [vmem:[#allocation6 + $0x8] sm:$0xf]
        %v571 = vld [vmem:[#allocation6 + $0xc] sm:$0xff]
        %v572 = vld [vmem:[#allocation6 + $0x14] sm:$0xf]
        %v573 = vld [vmem:[#allocation6 + $0x18] sm:$0xff]
        %v574 = vld [vmem:[#allocation6 + $0x20] sm:$0xf]
        %v575 = vld [vmem:[#allocation6 + $0x24] sm:$0xff]
        %v576 = vld [vmem:[#allocation6 + $0x2c] sm:$0xf]
        %v577 = vld [vmem:[#allocation6 + $0x30] sm:$0xff]
        %v578 = vld [vmem:[#allocation6 + $0x38] sm:$0xf]
        %v579 = vld [vmem:[#allocation6 + $0x3c] sm:$0xff]
        %v580 = vld [vmem:[#allocation6 + $0x44] sm:$0xf]
        %v581 = vld [vmem:[#allocation6 + $0x48] sm:$0xff]
        %v582 = vld [vmem:[#allocation6 + $0x50] sm:$0xf]
        %v583 = vld [vmem:[#allocation6 + $0x54] sm:$0xff]
        %v584 = vld [vmem:[#allocation6 + $0x5c] sm:$0xf]
        %v585 = vld [vmem:[#allocation6 + $0x60] sm:$0xff]
        %v586 = vld [vmem:[#allocation6 + $0x68] sm:$0xf]
        %v587 = vld [vmem:[#allocation6 + $0x6c] sm:$0xff]
        %v588 = vld [vmem:[#allocation6 + $0x74] sm:$0xf]
        %v589 = vld [vmem:[#allocation6 + $0x78] sm:$0xff]
        %v590 = vld [vmem:[#allocation6 + $0x80] sm:$0xf]
        %v591 = vld [vmem:[#allocation6 + $0x84] sm:$0xff]
        %v592 = vld [vmem:[#allocation6 + $0x8c] sm:$0xf]
        %v593 = vld [vmem:[#allocation6 + $0x90] sm:$0xff]
        %v594 = vld [vmem:[#allocation6 + $0x98] sm:$0xf]
        %v595 = vld [vmem:[#allocation6 + $0x9c] sm:$0xff]
        %v596 = vld [vmem:[#allocation6 + $0xa4] sm:$0xf]
        %v597 = vld [vmem:[#allocation6 + $0xa8] sm:$0xff]
        %v598 = vld [vmem:[#allocation6 + $0xb0] sm:$0xf]
        %v599 = vld [vmem:[#allocation6 + $0xb4] sm:$0xff]
        %v600 = vld [vmem:[#allocation6 + $0xbc] sm:$0xf]
        %v601 = vld [vmem:[%s4] sm:$0x7]
        %v603 = vperm.slane %v601, 0
        %v604 = vperm.slane %v601, 1
        %v605 = vperm.slane %v601, 2
        %v641 = vunpack.c.l.b16 %v569
        %v642 = vunpack.c.h.b16 %v569
        %v643 = vunpack.c.l.b16 %v570
        %v644 = vunpack.c.l.b16 %v571
        %v645 = vunpack.c.h.b16 %v571
        %v646 = vunpack.c.l.b16 %v572
        %v647 = vunpack.c.l.b16 %v573
        %v648 = vunpack.c.h.b16 %v573
        %v649 = vunpack.c.l.b16 %v574
        %v650 = vunpack.c.l.b16 %v575
        %v651 = vunpack.c.h.b16 %v575
        %v652 = vunpack.c.l.b16 %v576
        %v653 = vunpack.c.l.b16 %v577
        %v654 = vunpack.c.h.b16 %v577
        %v655 = vunpack.c.l.b16 %v578
        %v656 = vunpack.c.l.b16 %v579
        %v657 = vunpack.c.h.b16 %v579
        %v658 = vunpack.c.l.b16 %v580
        %v659 = vunpack.c.l.b16 %v581
        %v660 = vunpack.c.h.b16 %v581
        %v661 = vunpack.c.l.b16 %v582
        %v662 = vunpack.c.l.b16 %v583
        %v663 = vunpack.c.h.b16 %v583
        %v664 = vunpack.c.l.b16 %v584
        %v665 = vunpack.c.l.b16 %v585
        %v666 = vunpack.c.h.b16 %v585
        %v667 = vunpack.c.l.b16 %v586
        %v668 = vunpack.c.l.b16 %v587
        %v669 = vunpack.c.h.b16 %v587
        %v670 = vunpack.c.l.b16 %v588
        %v671 = vunpack.c.l.b16 %v589
        %v672 = vunpack.c.h.b16 %v589
        %v673 = vunpack.c.l.b16 %v590
        %v674 = vunpack.c.l.b16 %v591
        %v675 = vunpack.c.h.b16 %v591
        %v676 = vunpack.c.l.b16 %v592
        %v677 = vunpack.c.l.b16 %v593
        %v678 = vunpack.c.h.b16 %v593
        %v679 = vunpack.c.l.b16 %v594
        %v680 = vunpack.c.l.b16 %v595
        %v681 = vunpack.c.h.b16 %v595
        %v682 = vunpack.c.l.b16 %v596
        %v683 = vunpack.c.l.b16 %v597
        %v684 = vunpack.c.h.b16 %v597
        %v685 = vunpack.c.l.b16 %v598
        %v686 = vunpack.c.l.b16 %v599
        %v687 = vunpack.c.h.b16 %v599
        %v688 = vunpack.c.l.b16 %v600
        %v689 = vpack.c.b16 %v644, %v641
        %v690 = vpack.c.b16 %v645, %v642
        %v691 = vpack.c.b16 %v646, %v643
        %v692 = vpack.c.b16 %v650, %v647
        %v693 = vpack.c.b16 %v651, %v648
        %v694 = vpack.c.b16 %v652, %v649
        %v695 = vpack.c.b16 %v656, %v653
        %v696 = vpack.c.b16 %v657, %v654
        %v697 = vpack.c.b16 %v658, %v655
        %v698 = vpack.c.b16 %v662, %v659
        %v699 = vpack.c.b16 %v663, %v660
        %v700 = vpack.c.b16 %v664, %v661
        %v701 = vpack.c.b16 %v668, %v665
        %v702 = vpack.c.b16 %v669, %v666
        %v703 = vpack.c.b16 %v670, %v667
        %v704 = vpack.c.b16 %v674, %v671
        %v705 = vpack.c.b16 %v675, %v672
        %v706 = vpack.c.b16 %v676, %v673
        %v707 = vpack.c.b16 %v680, %v677
        %v708 = vpack.c.b16 %v681, %v678
        %v709 = vpack.c.b16 %v682, %v679
        %v710 = vpack.c.b16 %v686, %v683
        %v711 = vpack.c.b16 %v687, %v684
        %v712 = vpack.c.b16 %v688, %v685
        %737 = vmatpush.bf16.msra.mxu0 %v710
        %738 = vmatpush.bf16.msra.mxu0 %v707
        %739 = vmatpush.bf16.msra.mxu0 %v704
        %740 = vmatpush.bf16.msra.mxu0 %v701
        %741 = vmatpush.bf16.msra.mxu0 %v698
        %742 = vmatpush.bf16.msra.mxu0 %v695
        %743 = vmatpush.bf16.msra.mxu0 %v692
        %744 = vmatpush.bf16.msra.mxu0 %v689
        %745 = vmatmul.bf16.gmra.mxu0 %v568
        %v746 = vpop.f32.mrf.mxu0
        %v747 = vadd.f32 %v603, %v746
        %v748 = vpop.f32.mrf.mxu0
        %v749 = vadd.f32 %v603, %v748
        %750 = vdwg.mxu0
        %751 = vmatpush.bf16.msra.mxu0 %v711
        %752 = vmatpush.bf16.msra.mxu0 %v708
        %753 = vmatpush.bf16.msra.mxu0 %v705
        %754 = vmatpush.bf16.msra.mxu0 %v702
        %755 = vmatpush.bf16.msra.mxu0 %v699
        %756 = vmatpush.bf16.msra.mxu0 %v696
        %757 = vmatpush.bf16.msra.mxu0 %v693
        %758 = vmatpush.bf16.msra.mxu0 %v690
        %759 = vmatmul.bf16.gmra.mxu0 %v568
        %v760 = vpop.f32.mrf.mxu0
        %v761 = vadd.f32 %v604, %v760
        %v762 = vpop.f32.mrf.mxu0
        %v763 = vadd.f32 %v604, %v762
        %764 = vdwg.mxu0
        %765 = vmatpush.bf16.msra.mxu0 %v712
        %766 = vmatpush.bf16.msra.mxu0 %v709
        %767 = vmatpush.bf16.msra.mxu0 %v706
        %768 = vmatpush.bf16.msra.mxu0 %v703
        %769 = vmatpush.bf16.msra.mxu0 %v700
        %770 = vmatpush.bf16.msra.mxu0 %v697
        %771 = vmatpush.bf16.msra.mxu0 %v694
        %772 = vmatpush.bf16.msra.mxu0 %v691
        %773 = vmatmul.bf16.gmra.mxu0 %v568
        %v774 = vpop.f32.mrf.mxu0
        %v775 = vadd.f32 %v605, %v774
        %v776 = vpop.f32.mrf.mxu0
        %v777 = vadd.f32 %v605, %v776
        %778 = vdwg.mxu0
        %v779 = vpack.c.bf16 %v747, %v747
        %v780 = vpack.c.bf16 %v749, %v749
        %vm781 = vcmask 257024
        %782 = vst.msk [vmem:[#allocation2] sm:$0xf] %vm781, %v779
        %783 = vst.msk [vmem:[#allocation2 + $0x4] sm:$0xf] %vm781, %v780
        %v784 = vpack.c.bf16 %v761, %v761
        %v785 = vpack.c.bf16 %v763, %v763
        %786 = vst.msk [vmem:[#allocation3] sm:$0xf] %vm781, %v784
        %787 = vst.msk [vmem:[#allocation3 + $0x4] sm:$0xf] %vm781, %v785
        %v788 = vpack.c.bf16 %v775, %v775
        %v789 = vpack.c.bf16 %v777, %v777
        %790 = vst.msk [vmem:[#allocation4] sm:$0xf] %vm781, %v788
        %791 = vst.msk [vmem:[#allocation4 + $0x4] sm:$0xf] %vm781, %v789
        %794 = vrot.lane.b32.xlu0 %v779, 96
        %v795 = vpop.permute.xlu0 %794
        %796 = vrot.lane.b32.xlu0 %v780, 96
        %v797 = vpop.permute.xlu0 %796
        %s800 = scalar_lea.vmem [#allocation2], 8
        %801 = vst.msk [vmem:[%s800] sm:$0xf] %vm781, %v795
        %802 = vst.msk [vmem:[%s800 + $0x4] sm:$0xf] %vm781, %v797
        %805 = vrot.lane.b32.xlu0 %v784, 96
        %v806 = vpop.permute.xlu0 %805
        %807 = vrot.lane.b32.xlu0 %v785, 96
        %v808 = vpop.permute.xlu0 %807
        %s811 = scalar_lea.vmem [#allocation3], 8
        %812 = vst.msk [vmem:[%s811] sm:$0xf] %vm781, %v806
        %813 = vst.msk [vmem:[%s811 + $0x4] sm:$0xf] %vm781, %v808
        %816 = vrot.lane.b32.xlu0 %v788, 96
        %v817 = vpop.permute.xlu0 %816
        %818 = vrot.lane.b32.xlu0 %v789, 96
        %v819 = vpop.permute.xlu0 %818
        %s822 = scalar_lea.vmem [#allocation4], 8
        %823 = vst.msk [vmem:[%s822] sm:$0xf] %vm781, %v817
        %824 = vst.msk [vmem:[%s822 + $0x4] sm:$0xf] %vm781, %v819
        %825 = vrot.lane.b32.xlu0 %v779, 64
        %v826 = vpop.permute.xlu0 %825
        %827 = vrot.lane.b32.xlu0 %v780, 64
        %v828 = vpop.permute.xlu0 %827
        %s831 = scalar_lea.vmem [#allocation2], 16
        %832 = vst.msk [vmem:[%s831] sm:$0xf] %vm781, %v826
        %833 = vst.msk [vmem:[%s831 + $0x4] sm:$0xf] %vm781, %v828
        %834 = vrot.lane.b32.xlu0 %v784, 64
        %v835 = vpop.permute.xlu0 %834
        %836 = vrot.lane.b32.xlu0 %v785, 64
        %v837 = vpop.permute.xlu0 %836
        %s840 = scalar_lea.vmem [#allocation3], 16
        %841 = vst.msk [vmem:[%s840] sm:$0xf] %vm781, %v835
        %842 = vst.msk [vmem:[%s840 + $0x4] sm:$0xf] %vm781, %v837
        %843 = vrot.lane.b32.xlu0 %v788, 64
        %v844 = vpop.permute.xlu0 %843
        %845 = vrot.lane.b32.xlu0 %v789, 64
        %v846 = vpop.permute.xlu0 %845
        %s849 = scalar_lea.vmem [#allocation4], 16
        %850 = vst.msk [vmem:[%s849] sm:$0xf] %vm781, %v844
        %851 = vst.msk [vmem:[%s849 + $0x4] sm:$0xf] %vm781, %v846
        %852 = vrot.lane.b32.xlu0 %v779, 32
        %v853 = vpop.permute.xlu0 %852
        %854 = vrot.lane.b32.xlu0 %v780, 32
        %v855 = vpop.permute.xlu0 %854
        %s858 = scalar_lea.vmem [#allocation2], 24
        %859 = vst.msk [vmem:[%s858] sm:$0xf] %vm781, %v853
        %860 = vst.msk [vmem:[%s858 + $0x4] sm:$0xf] %vm781, %v855
        %861 = vrot.lane.b32.xlu0 %v784, 32
        %v862 = vpop.permute.xlu0 %861
        %863 = vrot.lane.b32.xlu0 %v785, 32
        %v864 = vpop.permute.xlu0 %863
        %s867 = scalar_lea.vmem [#allocation3], 24
        %868 = vst.msk [vmem:[%s867] sm:$0xf] %vm781, %v862
        %869 = vst.msk [vmem:[%s867 + $0x4] sm:$0xf] %vm781, %v864
        %870 = vrot.lane.b32.xlu0 %v788, 32
        %v871 = vpop.permute.xlu0 %870
        %872 = vrot.lane.b32.xlu0 %v789, 32
        %v873 = vpop.permute.xlu0 %872
        %s876 = scalar_lea.vmem [#allocation4], 24
        %877 = vst.msk [vmem:[%s876] sm:$0xf] %vm781, %v871
        %878 = vst.msk [vmem:[%s876 + $0x4] sm:$0xf] %vm781, %v873
        %v879 = vld [vmem:[#allocation2] sm:$0xf]
        %v880 = vld [vmem:[#allocation2 + $0x4] sm:$0xf]
        %v881 = vld [vmem:[#allocation2 + $0x8] sm:$0xf]
        %v882 = vld [vmem:[#allocation2 + $0xc] sm:$0xf]
        %v883 = vld [vmem:[#allocation2 + $0x10] sm:$0xf]
        %v884 = vld [vmem:[#allocation2 + $0x14] sm:$0xf]
        %v885 = vld [vmem:[#allocation2 + $0x18] sm:$0xf]
        %v886 = vld [vmem:[#allocation2 + $0x1c] sm:$0xf]
        %v887 = vld [vmem:[#allocation3] sm:$0xf]
        %v888 = vld [vmem:[#allocation3 + $0x4] sm:$0xf]
        %v889 = vld [vmem:[#allocation3 + $0x8] sm:$0xf]
        %v890 = vld [vmem:[#allocation3 + $0xc] sm:$0xf]
        %v891 = vld [vmem:[#allocation3 + $0x10] sm:$0xf]
        %v892 = vld [vmem:[#allocation3 + $0x14] sm:$0xf]
        %v893 = vld [vmem:[#allocation3 + $0x18] sm:$0xf]
        %v894 = vld [vmem:[#allocation3 + $0x1c] sm:$0xf]
        %v895 = vld [vmem:[#allocation4] sm:$0xf]
        %v896 = vld [vmem:[#allocation4 + $0x4] sm:$0xf]
        %v897 = vld [vmem:[#allocation4 + $0x8] sm:$0xf]
        %v898 = vld [vmem:[#allocation4 + $0xc] sm:$0xf]
        %v899 = vld [vmem:[#allocation4 + $0x10] sm:$0xf]
        %v900 = vld [vmem:[#allocation4 + $0x14] sm:$0xf]
        %v901 = vld [vmem:[#allocation4 + $0x18] sm:$0xf]
        %v902 = vld [vmem:[#allocation4 + $0x1c] sm:$0xf]
        %v905 = vunpack.c.l.b16 %v879
        %v906 = vunpack.c.l.b16 %v880
        %v907 = vpack.c.b16 %v906, %v905
        %v910 = vunpack.c.l.b16 %v887
        %v911 = vunpack.c.l.b16 %v888
        %v912 = vpack.c.b16 %v911, %v910
        %vm913 = vcmask 261120
        %v915 = vsel %vm913, %v907, 0
        %v918 = vsel %vm913, %v912, 0
        %920 = vmatpush.bf16.xpose.msra.mxu0 0
        %921 = vmatpush.bf16.xpose.msra.mxu0 0
        %922 = vmatpush.bf16.xpose.msra.mxu0 0
        %923 = vmatpush.bf16.xpose.msra.mxu0 0
        %924 = vmatpush.bf16.xpose.msra.mxu0 0
        %925 = vmatpush.bf16.xpose.msra.mxu0 0
        %926 = vmatpush.bf16.xpose.msra.mxu0 0
        %927 = vmatpush.bf16.xpose.msra.mxu0 %v918
        %928 = vmatmul.bf16.gmra.mxu0 %v915
        %v929 = vpop.f32.mrf.mxu0
        %v930 = vadd.f32 0.0, %v929
        %v931 = vpop.f32.mrf.mxu0
        %v932 = vadd.f32 0.0, %v931
        %933 = vdwg.mxu0
        %v936 = vunpack.c.l.b16 %v881
        %v937 = vunpack.c.l.b16 %v882
        %v938 = vpack.c.b16 %v937, %v936
        %v941 = vunpack.c.l.b16 %v889
        %v942 = vunpack.c.l.b16 %v890
        %v943 = vpack.c.b16 %v942, %v941
        %v945 = vsel %vm913, %v938, 0
        %v948 = vsel %vm913, %v943, 0
        %950 = vmatpush.bf16.xpose.msra.mxu0 0
        %951 = vmatpush.bf16.xpose.msra.mxu0 0
        %952 = vmatpush.bf16.xpose.msra.mxu0 0
        %953 = vmatpush.bf16.xpose.msra.mxu0 0
        %954 = vmatpush.bf16.xpose.msra.mxu0 0
        %955 = vmatpush.bf16.xpose.msra.mxu0 0
        %956 = vmatpush.bf16.xpose.msra.mxu0 0
        %957 = vmatpush.bf16.xpose.msra.mxu0 %v948
        %958 = vmatmul.bf16.gmra.mxu0 %v945
        %v959 = vpop.f32.mrf.mxu0
        %v960 = vadd.f32 0.0, %v959
        %v961 = vpop.f32.mrf.mxu0
        %v962 = vadd.f32 0.0, %v961
        %963 = vdwg.mxu0
        %v966 = vunpack.c.l.b16 %v883
        %v967 = vunpack.c.l.b16 %v884
        %v968 = vpack.c.b16 %v967, %v966
        %v971 = vunpack.c.l.b16 %v891
        %v972 = vunpack.c.l.b16 %v892
        %v973 = vpack.c.b16 %v972, %v971
        %v975 = vsel %vm913, %v968, 0
        %v978 = vsel %vm913, %v973, 0
        %980 = vmatpush.bf16.xpose.msra.mxu0 0
        %981 = vmatpush.bf16.xpose.msra.mxu0 0
        %982 = vmatpush.bf16.xpose.msra.mxu0 0
        %983 = vmatpush.bf16.xpose.msra.mxu0 0
        %984 = vmatpush.bf16.xpose.msra.mxu0 0
        %985 = vmatpush.bf16.xpose.msra.mxu0 0
        %986 = vmatpush.bf16.xpose.msra.mxu0 0
        %987 = vmatpush.bf16.xpose.msra.mxu0 %v978
        %988 = vmatmul.bf16.gmra.mxu0 %v975
        %v989 = vpop.f32.mrf.mxu0
        %v990 = vadd.f32 0.0, %v989
        %v991 = vpop.f32.mrf.mxu0
        %v992 = vadd.f32 0.0, %v991
        %993 = vdwg.mxu0
        %v996 = vunpack.c.l.b16 %v885
        %v997 = vunpack.c.l.b16 %v886
        %v998 = vpack.c.b16 %v997, %v996
        %v1001 = vunpack.c.l.b16 %v893
        %v1002 = vunpack.c.l.b16 %v894
        %v1003 = vpack.c.b16 %v1002, %v1001
        %v1005 = vsel %vm913, %v998, 0
        %v1008 = vsel %vm913, %v1003, 0
        %1010 = vmatpush.bf16.xpose.msra.mxu0 0
        %1011 = vmatpush.bf16.xpose.msra.mxu0 0
        %1012 = vmatpush.bf16.xpose.msra.mxu0 0
        %1013 = vmatpush.bf16.xpose.msra.mxu0 0
        %1014 = vmatpush.bf16.xpose.msra.mxu0 0
        %1015 = vmatpush.bf16.xpose.msra.mxu0 0
        %1016 = vmatpush.bf16.xpose.msra.mxu0 0
        %1017 = vmatpush.bf16.xpose.msra.mxu0 %v1008
        %1018 = vmatmul.bf16.gmra.mxu0 %v1005
        %v1019 = vpop.f32.mrf.mxu0
        %v1020 = vadd.f32 0.0, %v1019
        %v1021 = vpop.f32.mrf.mxu0
        %v1022 = vadd.f32 0.0, %v1021
        %1023 = vdwg.mxu0
        %vm1024 = vcmask 130048
        %v1025 = vsel %vm1024, %v930, -inf
        %1026 = vmax.xlane.f32.xlu0 %v1025
        %v1027 = vpop.xlane.xlu0 %1026
        %v1028 = vsel %vm1024, %v932, -inf
        %1029 = vmax.xlane.f32.xlu0 %v1028
        %v1030 = vpop.xlane.xlu0 %1029
        %v1031 = vsel %vm1024, %v960, -inf
        %1032 = vmax.xlane.f32.xlu0 %v1031
        %v1033 = vpop.xlane.xlu0 %1032
        %v1034 = vsel %vm1024, %v962, -inf
        %1035 = vmax.xlane.f32.xlu0 %v1034
        %v1036 = vpop.xlane.xlu0 %1035
        %v1037 = vsel %vm1024, %v990, -inf
        %1038 = vmax.xlane.f32.xlu0 %v1037
        %v1039 = vpop.xlane.xlu0 %1038
        %v1040 = vsel %vm1024, %v992, -inf
        %1041 = vmax.xlane.f32.xlu0 %v1040
        %v1042 = vpop.xlane.xlu0 %1041
        %v1043 = vsel %vm1024, %v1020, -inf
        %1044 = vmax.xlane.f32.xlu0 %v1043
        %v1045 = vpop.xlane.xlu0 %1044
        %v1046 = vsel %vm1024, %v1022, -inf
        %1047 = vmax.xlane.f32.xlu0 %v1046
        %v1048 = vpop.xlane.xlu0 %1047
        %v1049 = vsub.f32 -inf, %v1027
        %v1050 = vsub.f32 -inf, %v1030
        %v1051 = vsub.f32 -inf, %v1033
        %v1052 = vsub.f32 -inf, %v1036
        %v1053 = vsub.f32 -inf, %v1039
        %v1054 = vsub.f32 -inf, %v1042
        %v1055 = vsub.f32 -inf, %v1045
        %v1056 = vsub.f32 -inf, %v1048
        %v1057 = vmul.f32 %v1049, 1.442695
        %v1058 = vpow.pop %v1057
        %v1059 = vmul.f32 %v1050, 1.442695
        %v1060 = vpow.pop %v1059
        %v1061 = vmul.f32 %v1051, 1.442695
        %v1062 = vpow.pop %v1061
        %v1063 = vmul.f32 %v1052, 1.442695
        %v1064 = vpow.pop %v1063
        %v1065 = vmul.f32 %v1053, 1.442695
        %v1066 = vpow.pop %v1065
        %v1067 = vmul.f32 %v1054, 1.442695
        %v1068 = vpow.pop %v1067
        %v1069 = vmul.f32 %v1055, 1.442695
        %v1070 = vpow.pop %v1069
        %v1071 = vmul.f32 %v1056, 1.442695
        %v1072 = vpow.pop %v1071
        %v1073 = vsub.f32 %v930, %v1027
        %v1074 = vsub.f32 %v932, %v1030
        %v1075 = vsub.f32 %v960, %v1033
        %v1076 = vsub.f32 %v962, %v1036
        %v1077 = vsub.f32 %v990, %v1039
        %v1078 = vsub.f32 %v992, %v1042
        %v1079 = vsub.f32 %v1020, %v1045
        %v1080 = vsub.f32 %v1022, %v1048
        %v1081 = vmul.f32 %v1073, 1.442695
        %v1082 = vpow.pop %v1081
        %v1083 = vmul.f32 %v1074, 1.442695
        %v1084 = vpow.pop %v1083
        %v1085 = vmul.f32 %v1075, 1.442695
        %v1086 = vpow.pop %v1085
        %v1087 = vmul.f32 %v1076, 1.442695
        %v1088 = vpow.pop %v1087
        %v1089 = vmul.f32 %v1077, 1.442695
        %v1090 = vpow.pop %v1089
        %v1091 = vmul.f32 %v1078, 1.442695
        %v1092 = vpow.pop %v1091
        %v1093 = vmul.f32 %v1079, 1.442695
        %v1094 = vpow.pop %v1093
        %v1095 = vmul.f32 %v1080, 1.442695
        %v1096 = vpow.pop %v1095
        %v1097 = vmul.f32 %v1058, 0.0
        %v1098 = vmul.f32 %v1060, 0.0
        %v1099 = vmul.f32 %v1062, 0.0
        %v1100 = vmul.f32 %v1064, 0.0
        %v1101 = vmul.f32 %v1066, 0.0
        %v1102 = vmul.f32 %v1068, 0.0
        %v1103 = vmul.f32 %v1070, 0.0
        %v1104 = vmul.f32 %v1072, 0.0
        %v1105 = vsel %vm1024, %v1082, 0.0
        %1106 = vadd.xlane.f32.xlu0 %v1105
        %v1107 = vpop.xlane.xlu0 %1106
        %v1108 = vsel %vm1024, %v1084, 0.0
        %1109 = vadd.xlane.f32.xlu0 %v1108
        %v1110 = vpop.xlane.xlu0 %1109
        %v1111 = vsel %vm1024, %v1086, 0.0
        %1112 = vadd.xlane.f32.xlu0 %v1111
        %v1113 = vpop.xlane.xlu0 %1112
        %v1114 = vsel %vm1024, %v1088, 0.0
        %1115 = vadd.xlane.f32.xlu0 %v1114
        %v1116 = vpop.xlane.xlu0 %1115
        %v1117 = vsel %vm1024, %v1090, 0.0
        %1118 = vadd.xlane.f32.xlu0 %v1117
        %v1119 = vpop.xlane.xlu0 %1118
        %v1120 = vsel %vm1024, %v1092, 0.0
        %1121 = vadd.xlane.f32.xlu0 %v1120
        %v1122 = vpop.xlane.xlu0 %1121
        %v1123 = vsel %vm1024, %v1094, 0.0
        %1124 = vadd.xlane.f32.xlu0 %v1123
        %v1125 = vpop.xlane.xlu0 %1124
        %v1126 = vsel %vm1024, %v1096, 0.0
        %1127 = vadd.xlane.f32.xlu0 %v1126
        %v1128 = vpop.xlane.xlu0 %1127
        %v1129 = vadd.f32 %v1097, %v1107
        %v1130 = vadd.f32 %v1098, %v1110
        %v1131 = vadd.f32 %v1099, %v1113
        %v1132 = vadd.f32 %v1100, %v1116
        %v1133 = vadd.f32 %v1101, %v1119
        %v1134 = vadd.f32 %v1102, %v1122
        %v1135 = vadd.f32 %v1103, %v1125
        %v1136 = vadd.f32 %v1104, %v1128
        %v1137 = vpack.c.bf16 %v1082, %v1082
        %v1138 = vpack.c.bf16 %v1084, %v1084
        %v1139 = vpack.c.bf16 %v1086, %v1086
        %v1140 = vpack.c.bf16 %v1088, %v1088
        %v1141 = vpack.c.bf16 %v1090, %v1090
        %v1142 = vpack.c.bf16 %v1092, %v1092
        %v1143 = vpack.c.bf16 %v1094, %v1094
        %v1144 = vpack.c.bf16 %v1096, %v1096
        %v1147 = vunpack.c.l.b16 %v1137
        %v1148 = vunpack.c.l.b16 %v1138
        %v1149 = vpack.c.b16 %v1148, %v1147
        %v1152 = vunpack.c.l.b16 %v895
        %v1153 = vunpack.c.l.b16 %v896
        %v1154 = vpack.c.b16 %v1153, %v1152
        %v1157 = vsel %vm1024, %v1149, 0
        %1159 = vmatpush.bf16.msra.mxu0 0
        %1160 = vmatpush.bf16.msra.mxu0 0
        %1161 = vmatpush.bf16.msra.mxu0 0
        %1162 = vmatpush.bf16.msra.mxu0 0
        %1163 = vmatpush.bf16.msra.mxu0 0
        %1164 = vmatpush.bf16.msra.mxu0 0
        %1165 = vmatpush.bf16.msra.mxu0 0
        %1166 = vmatpush.bf16.msra.mxu0 %v1154
        %1167 = vmatmul.bf16.gmra.mxu0 %v1157
        %v1168 = vpop.f32.mrf.mxu0
        %v1169 = vadd.f32 0.0, %v1168
        %v1170 = vpop.f32.mrf.mxu0
        %v1171 = vadd.f32 0.0, %v1170
        %1172 = vdwg.mxu0
        %v1175 = vunpack.c.l.b16 %v1139
        %v1176 = vunpack.c.l.b16 %v1140
        %v1177 = vpack.c.b16 %v1176, %v1175
        %v1180 = vunpack.c.l.b16 %v897
        %v1181 = vunpack.c.l.b16 %v898
        %v1182 = vpack.c.b16 %v1181, %v1180
        %v1185 = vsel %vm1024, %v1177, 0
        %1187 = vmatpush.bf16.msra.mxu0 0
        %1188 = vmatpush.bf16.msra.mxu0 0
        %1189 = vmatpush.bf16.msra.mxu0 0
        %1190 = vmatpush.bf16.msra.mxu0 0
        %1191 = vmatpush.bf16.msra.mxu0 0
        %1192 = vmatpush.bf16.msra.mxu0 0
        %1193 = vmatpush.bf16.msra.mxu0 0
        %1194 = vmatpush.bf16.msra.mxu0 %v1182
        %1195 = vmatmul.bf16.gmra.mxu0 %v1185
        %v1196 = vpop.f32.mrf.mxu0
        %v1197 = vadd.f32 0.0, %v1196
        %v1198 = vpop.f32.mrf.mxu0
        %v1199 = vadd.f32 0.0, %v1198
        %1200 = vdwg.mxu0
        %v1203 = vunpack.c.l.b16 %v1141
        %v1204 = vunpack.c.l.b16 %v1142
        %v1205 = vpack.c.b16 %v1204, %v1203
        %v1208 = vunpack.c.l.b16 %v899
        %v1209 = vunpack.c.l.b16 %v900
        %v1210 = vpack.c.b16 %v1209, %v1208
        %v1213 = vsel %vm1024, %v1205, 0
        %1215 = vmatpush.bf16.msra.mxu0 0
        %1216 = vmatpush.bf16.msra.mxu0 0
        %1217 = vmatpush.bf16.msra.mxu0 0
        %1218 = vmatpush.bf16.msra.mxu0 0
        %1219 = vmatpush.bf16.msra.mxu0 0
        %1220 = vmatpush.bf16.msra.mxu0 0
        %1221 = vmatpush.bf16.msra.mxu0 0
        %1222 = vmatpush.bf16.msra.mxu0 %v1210
        %1223 = vmatmul.bf16.gmra.mxu0 %v1213
        %v1224 = vpop.f32.mrf.mxu0
        %v1225 = vadd.f32 0.0, %v1224
        %v1226 = vpop.f32.mrf.mxu0
        %v1227 = vadd.f32 0.0, %v1226
        %1228 = vdwg.mxu0
        %v1231 = vunpack.c.l.b16 %v1143
        %v1232 = vunpack.c.l.b16 %v1144
        %v1233 = vpack.c.b16 %v1232, %v1231
        %v1236 = vunpack.c.l.b16 %v901
        %v1237 = vunpack.c.l.b16 %v902
        %v1238 = vpack.c.b16 %v1237, %v1236
        %v1241 = vsel %vm1024, %v1233, 0
        %1243 = vmatpush.bf16.msra.mxu0 0
        %1244 = vmatpush.bf16.msra.mxu0 0
        %1245 = vmatpush.bf16.msra.mxu0 0
        %1246 = vmatpush.bf16.msra.mxu0 0
        %1247 = vmatpush.bf16.msra.mxu0 0
        %1248 = vmatpush.bf16.msra.mxu0 0
        %1249 = vmatpush.bf16.msra.mxu0 0
        %1250 = vmatpush.bf16.msra.mxu0 %v1238
        %1251 = vmatmul.bf16.gmra.mxu0 %v1241
        %v1252 = vpop.f32.mrf.mxu0
        %v1253 = vadd.f32 0.0, %v1252
        %v1254 = vpop.f32.mrf.mxu0
        %v1255 = vadd.f32 0.0, %v1254
        %1256 = vdwg.mxu0
        %v1257 = vadd.f32 %v1097, %v1169
        %v1258 = vadd.f32 %v1098, %v1171
        %v1259 = vadd.f32 %v1099, %v1197
        %v1260 = vadd.f32 %v1100, %v1199
        %v1261 = vadd.f32 %v1101, %v1225
        %v1262 = vadd.f32 %v1102, %v1227
        %v1263 = vadd.f32 %v1103, %v1253
        %v1264 = vadd.f32 %v1104, %v1255
        %v1265 = vrcp.pop %v1129
        %v1266 = vrcp.pop %v1130
        %v1267 = vrcp.pop %v1131
        %v1268 = vrcp.pop %v1132
        %v1269 = vrcp.pop %v1133
        %v1270 = vrcp.pop %v1134
        %v1271 = vrcp.pop %v1135
        %v1272 = vrcp.pop %v1136
        %v1273 = vmul.f32 %v1129, %v1265
        %v1274 = vmul.f32 %v1130, %v1266
        %v1275 = vmul.f32 %v1131, %v1267
        %v1276 = vmul.f32 %v1132, %v1268
        %v1277 = vmul.f32 %v1133, %v1269
        %v1278 = vmul.f32 %v1134, %v1270
        %v1279 = vmul.f32 %v1135, %v1271
        %v1280 = vmul.f32 %v1136, %v1272
        %v1281 = vsub.f32 2.0, %v1273
        %v1282 = vsub.f32 2.0, %v1274
        %v1283 = vsub.f32 2.0, %v1275
        %v1284 = vsub.f32 2.0, %v1276
        %v1285 = vsub.f32 2.0, %v1277
        %v1286 = vsub.f32 2.0, %v1278
        %v1287 = vsub.f32 2.0, %v1279
        %v1288 = vsub.f32 2.0, %v1280
        %v1289 = vmul.f32 %v1265, %v1281
        %v1290 = vmul.f32 %v1266, %v1282
        %v1291 = vmul.f32 %v1267, %v1283
        %v1292 = vmul.f32 %v1268, %v1284
        %v1293 = vmul.f32 %v1269, %v1285
        %v1294 = vmul.f32 %v1270, %v1286
        %v1295 = vmul.f32 %v1271, %v1287
        %v1296 = vmul.f32 %v1272, %v1288
        %v1297 = vmul.f32 %v1257, %v1289
        %v1298 = vmul.f32 %v1258, %v1290
        %v1299 = vmul.f32 %v1259, %v1291
        %v1300 = vmul.f32 %v1260, %v1292
        %v1301 = vmul.f32 %v1261, %v1293
        %v1302 = vmul.f32 %v1262, %v1294
        %v1303 = vmul.f32 %v1263, %v1295
        %v1304 = vmul.f32 %v1264, %v1296
        %1305 = vst.msk [vmem:[#allocation5] sm:$0xff] %vm913, %v1297
        %1306 = vst.msk [vmem:[#allocation5 + $0x8] sm:$0xff] %vm913, %v1298
        %1309 = vrot.lane.b32.xlu0 %v1299, 32
        %v1310 = vpop.permute.xlu0 %1309
        %1311 = vrot.lane.b32.xlu0 %v1300, 32
        %v1312 = vpop.permute.xlu0 %1311
        %vm1315 = vcmask 523520
        %1316 = vst.msk [vmem:[#allocation5] sm:$0xff] %vm1315, %v1310
        %1317 = vst.msk [vmem:[#allocation5 + $0x8] sm:$0xff] %vm1315, %v1312
        %1320 = vrot.lane.b32.xlu0 %v1301, 64
        %v1321 = vpop.permute.xlu0 %1320
        %1322 = vrot.lane.b32.xlu0 %v1302, 64
        %v1323 = vpop.permute.xlu0 %1322
        %vm1326 = vcmask 785920
        %1327 = vst.msk [vmem:[#allocation5] sm:$0xff] %vm1326, %v1321
        %1328 = vst.msk [vmem:[#allocation5 + $0x8] sm:$0xff] %vm1326, %v1323
        %1331 = vrot.lane.b32.xlu0 %v1303, 96
        %v1332 = vpop.permute.xlu0 %1331
        %1333 = vrot.lane.b32.xlu0 %v1304, 96
        %v1334 = vpop.permute.xlu0 %1333
        %vm1337 = vcmask 1048320
        %1338 = vst.msk [vmem:[#allocation5] sm:$0xff] %vm1337, %v1332
        %1339 = vst.msk [vmem:[#allocation5 + $0x8] sm:$0xff] %vm1337, %v1334
        %v1340 = vld [vmem:[#allocation5] sm:$0xff]
        %v1341 = vld [vmem:[#allocation5 + $0x8] sm:$0xff]
        %v1342 = vpack.c.bf16 %v1341, %v1340
        %v1343 = vld [vmem:[%s5] sm:$0xf]
        %v1344 = vld [vmem:[%s5 + $0x4] sm:$0xf]
        %v1345 = vld [vmem:[%s5 + $0x8] sm:$0xf]
        %v1346 = vld [vmem:[%s5 + $0xc] sm:$0xf]
        %v1347 = vld [vmem:[%s5 + $0x10] sm:$0xf]
        %v1348 = vld [vmem:[%s5 + $0x14] sm:$0xf]
        %v1349 = vld [vmem:[%s5 + $0x18] sm:$0xf]
        %v1350 = vld [vmem:[%s5 + $0x1c] sm:$0xf]
        %v1351 = vld [vmem:[%s5 + $0x20] sm:$0xf]
        %v1352 = vld [vmem:[%s5 + $0x24] sm:$0xf]
        %v1353 = vld [vmem:[%s5 + $0x28] sm:$0xf]
        %v1354 = vld [vmem:[%s5 + $0x2c] sm:$0xf]
        %v1355 = vld [vmem:[%s5 + $0x30] sm:$0xf]
        %v1356 = vld [vmem:[%s5 + $0x34] sm:$0xf]
        %v1357 = vld [vmem:[%s5 + $0x38] sm:$0xf]
        %v1358 = vld [vmem:[%s5 + $0x3c] sm:$0xf]
        %v1359 = vld [vmem:[%s6] sm:$0x1]
        %v1361 = vperm.slane %v1359, 0
        %v1379 = vunpack.c.l.b16 %v1343
        %v1380 = vunpack.c.l.b16 %v1344
        %v1381 = vunpack.c.l.b16 %v1345
        %v1382 = vunpack.c.l.b16 %v1346
        %v1383 = vunpack.c.l.b16 %v1347
        %v1384 = vunpack.c.l.b16 %v1348
        %v1385 = vunpack.c.l.b16 %v1349
        %v1386 = vunpack.c.l.b16 %v1350
        %v1387 = vunpack.c.l.b16 %v1351
        %v1388 = vunpack.c.l.b16 %v1352
        %v1389 = vunpack.c.l.b16 %v1353
        %v1390 = vunpack.c.l.b16 %v1354
        %v1391 = vunpack.c.l.b16 %v1355
        %v1392 = vunpack.c.l.b16 %v1356
        %v1393 = vunpack.c.l.b16 %v1357
        %v1394 = vunpack.c.l.b16 %v1358
        %v1395 = vpack.c.b16 %v1380, %v1379
        %v1396 = vpack.c.b16 %v1382, %v1381
        %v1397 = vpack.c.b16 %v1384, %v1383
        %v1398 = vpack.c.b16 %v1386, %v1385
        %v1399 = vpack.c.b16 %v1388, %v1387
        %v1400 = vpack.c.b16 %v1390, %v1389
        %v1401 = vpack.c.b16 %v1392, %v1391
        %v1402 = vpack.c.b16 %v1394, %v1393
        %1411 = vmatpush.bf16.msra.mxu0 %v1402
        %1412 = vmatpush.bf16.msra.mxu0 %v1401
        %1413 = vmatpush.bf16.msra.mxu0 %v1400
        %1414 = vmatpush.bf16.msra.mxu0 %v1399
        %1415 = vmatpush.bf16.msra.mxu0 %v1398
        %1416 = vmatpush.bf16.msra.mxu0 %v1397
        %1417 = vmatpush.bf16.msra.mxu0 %v1396
        %1418 = vmatpush.bf16.msra.mxu0 %v1395
        %1419 = vmatmul.bf16.gmra.mxu0 %v1342
        %v1420 = vpop.f32.mrf.mxu0
        %v1421 = vadd.f32 %v1361, %v1420
        %v1422 = vpop.f32.mrf.mxu0
        %v1423 = vadd.f32 %v1361, %v1422
        %1424 = vdwg.mxu0
        %v1425 = vadd.f32 %v507, %v1421
        %v1426 = vadd.f32 %v508, %v1423
        %v1427 = vld [vmem:[%s7] sm:$0x1]
        %v1428 = vld [vmem:[%s8] sm:$0x1]
        %1429 = vadd.xlane.f32.xlu0 %v1425
        %v1430 = vpop.xlane.xlu0 %1429
        %1431 = vadd.xlane.f32.xlu0 %v1426
        %v1432 = vpop.xlane.xlu0 %1431
        %v1433 = vmul.f32 %v1430, %v521
        %v1434 = vmul.f32 %v1432, %v521
        %v1435 = vsub.f32 %v1425, %v1433
        %v1436 = vsub.f32 %v1426, %v1434
        %v1437 = vmul.f32 %v1435, %v1435
        %v1438 = vmul.f32 %v1436, %v1436
        %1439 = vadd.xlane.f32.xlu0 %v1437
        %v1440 = vpop.xlane.xlu0 %1439
        %1441 = vadd.xlane.f32.xlu0 %v1438
        %v1442 = vpop.xlane.xlu0 %1441
        %v1443 = vmul.f32 %v1440, %v521
        %v1444 = vmul.f32 %v1442, %v521
        %v1445 = vadd.f32 %v1443, 1e-05
        %v1446 = vadd.f32 %v1444, 1e-05
        %v1447 = vrsqrt.pop %v1445
        %v1448 = vmul.f32 %v1447, %v1445
        %v1449 = vmul.f32 %v1448, %v1447
        %v1450 = vmul.f32 0.5, %v1449
        %v1451 = vsub.f32 1.5, %v1450
        %v1452 = vmul.f32 %v1447, %v1451
        %vm1453 = vweird.f32 %v1445
        %vm1454 = vweird.f32 %v1447
        %vm1455 = vmor %vm1453, %vm1454
        %v1456 = vsel %vm1455, %v1447, %v1452
        %v1457 = vrsqrt.pop %v1446
        %v1458 = vmul.f32 %v1457, %v1446
        %v1459 = vmul.f32 %v1458, %v1457
        %v1460 = vmul.f32 0.5, %v1459
        %v1461 = vsub.f32 1.5, %v1460
        %v1462 = vmul.f32 %v1457, %v1461
        %vm1463 = vweird.f32 %v1446
        %vm1464 = vweird.f32 %v1457
        %vm1465 = vmor %vm1463, %vm1464
        %v1466 = vsel %vm1465, %v1457, %v1462
        %v1467 = vmul.f32 %v1435, %v1456
        %v1468 = vmul.f32 %v1436, %v1466
        %v1470 = vperm.slane %v1427, 0
        %v1472 = vmul.f32 %v1467, %v1470
        %v1473 = vmul.f32 %v1468, %v1470
        %v1475 = vperm.slane %v1428, 0
        %v1477 = vadd.f32 %v1472, %v1475
        %v1478 = vadd.f32 %v1473, %v1475
        %v1479 = vpack.c.bf16 %v1478, %v1477
        %v1480 = vld [vmem:[#allocation8] sm:$0xff]
        %v1481 = vld [vmem:[#allocation8 + $0x8] sm:$0xff]
        %v1482 = vld [vmem:[#allocation8 + $0x10] sm:$0xff]
        %v1483 = vld [vmem:[#allocation8 + $0x18] sm:$0xff]
        %v1484 = vld [vmem:[#allocation8 + $0x20] sm:$0xff]
        %v1485 = vld [vmem:[#allocation8 + $0x28] sm:$0xff]
        %v1486 = vld [vmem:[#allocation8 + $0x30] sm:$0xff]
        %v1487 = vld [vmem:[#allocation8 + $0x38] sm:$0xff]
        %v1488 = vld [vmem:[#allocation8 + $0x40] sm:$0xff]
        %v1489 = vld [vmem:[#allocation8 + $0x48] sm:$0xff]
        %v1490 = vld [vmem:[#allocation8 + $0x50] sm:$0xff]
        %v1491 = vld [vmem:[#allocation8 + $0x58] sm:$0xff]
        %v1492 = vld [vmem:[#allocation8 + $0x60] sm:$0xff]
        %v1493 = vld [vmem:[#allocation8 + $0x68] sm:$0xff]
        %v1494 = vld [vmem:[#allocation8 + $0x70] sm:$0xff]
        %v1495 = vld [vmem:[#allocation8 + $0x78] sm:$0xff]
        %v1496 = vld [vmem:[%s10] sm:$0x3]
        %v1498 = vperm.slane %v1496, 0
        %v1499 = vperm.slane %v1496, 1
        %v1518 = vunpack.c.l.b16 %v1480
        %v1519 = vunpack.c.h.b16 %v1480
        %v1520 = vunpack.c.l.b16 %v1481
        %v1521 = vunpack.c.h.b16 %v1481
        %v1522 = vunpack.c.l.b16 %v1482
        %v1523 = vunpack.c.h.b16 %v1482
        %v1524 = vunpack.c.l.b16 %v1483
        %v1525 = vunpack.c.h.b16 %v1483
        %v1526 = vunpack.c.l.b16 %v1484
        %v1527 = vunpack.c.h.b16 %v1484
        %v1528 = vunpack.c.l.b16 %v1485
        %v1529 = vunpack.c.h.b16 %v1485
        %v1530 = vunpack.c.l.b16 %v1486
        %v1531 = vunpack.c.h.b16 %v1486
        %v1532 = vunpack.c.l.b16 %v1487
        %v1533 = vunpack.c.h.b16 %v1487
        %v1534 = vunpack.c.l.b16 %v1488
        %v1535 = vunpack.c.h.b16 %v1488
        %v1536 = vunpack.c.l.b16 %v1489
        %v1537 = vunpack.c.h.b16 %v1489
        %v1538 = vunpack.c.l.b16 %v1490
        %v1539 = vunpack.c.h.b16 %v1490
        %v1540 = vunpack.c.l.b16 %v1491
        %v1541 = vunpack.c.h.b16 %v1491
        %v1542 = vunpack.c.l.b16 %v1492
        %v1543 = vunpack.c.h.b16 %v1492
        %v1544 = vunpack.c.l.b16 %v1493
        %v1545 = vunpack.c.h.b16 %v1493
        %v1546 = vunpack.c.l.b16 %v1494
        %v1547 = vunpack.c.h.b16 %v1494
        %v1548 = vunpack.c.l.b16 %v1495
        %v1549 = vunpack.c.h.b16 %v1495
        %v1550 = vpack.c.b16 %v1520, %v1518
        %v1551 = vpack.c.b16 %v1521, %v1519
        %v1552 = vpack.c.b16 %v1524, %v1522
        %v1553 = vpack.c.b16 %v1525, %v1523
        %v1554 = vpack.c.b16 %v1528, %v1526
        %v1555 = vpack.c.b16 %v1529, %v1527
        %v1556 = vpack.c.b16 %v1532, %v1530
        %v1557 = vpack.c.b16 %v1533, %v1531
        %v1558 = vpack.c.b16 %v1536, %v1534
        %v1559 = vpack.c.b16 %v1537, %v1535
        %v1560 = vpack.c.b16 %v1540, %v1538
        %v1561 = vpack.c.b16 %v1541, %v1539
        %v1562 = vpack.c.b16 %v1544, %v1542
        %v1563 = vpack.c.b16 %v1545, %v1543
        %v1564 = vpack.c.b16 %v1548, %v1546
        %v1565 = vpack.c.b16 %v1549, %v1547
        %1582 = vmatpush.bf16.msra.mxu0 %v1564
        %1583 = vmatpush.bf16.msra.mxu0 %v1562
        %1584 = vmatpush.bf16.msra.mxu0 %v1560
        %1585 = vmatpush.bf16.msra.mxu0 %v1558
        %1586 = vmatpush.bf16.msra.mxu0 %v1556
        %1587 = vmatpush.bf16.msra.mxu0 %v1554
        %1588 = vmatpush.bf16.msra.mxu0 %v1552
        %1589 = vmatpush.bf16.msra.mxu0 %v1550
        %1590 = vmatmul.bf16.gmra.mxu0 %v1479
        %v1591 = vpop.f32.mrf.mxu0
        %v1592 = vadd.f32 %v1498, %v1591
        %v1593 = vpop.f32.mrf.mxu0
        %v1594 = vadd.f32 %v1498, %v1593
        %1595 = vdwg.mxu0
        %1596 = vmatpush.bf16.msra.mxu0 %v1565
        %1597 = vmatpush.bf16.msra.mxu0 %v1563
        %1598 = vmatpush.bf16.msra.mxu0 %v1561
        %1599 = vmatpush.bf16.msra.mxu0 %v1559
        %1600 = vmatpush.bf16.msra.mxu0 %v1557
        %1601 = vmatpush.bf16.msra.mxu0 %v1555
        %1602 = vmatpush.bf16.msra.mxu0 %v1553
        %1603 = vmatpush.bf16.msra.mxu0 %v1551
        %1604 = vmatmul.bf16.gmra.mxu0 %v1479
        %v1605 = vpop.f32.mrf.mxu0
        %v1606 = vadd.f32 %v1499, %v1605
        %v1607 = vpop.f32.mrf.mxu0
        %v1608 = vadd.f32 %v1499, %v1607
        %1609 = vdwg.mxu0
        %v1610 = vmul.f32 %v1592, 0.5
        %v1611 = vmul.f32 %v1606, 0.5
        %v1612 = vmul.f32 %v1594, 0.5
        %v1613 = vmul.f32 %v1608, 0.5
        %v1614 = vmul.f32 %v1592, 0.70710677
        %v1615 = vmul.f32 %v1606, 0.70710677
        %v1616 = vmul.f32 %v1594, 0.70710677
        %v1617 = vmul.f32 %v1608, 0.70710677
        %v1618 = vand.u32 2147483647, %v1614
        %v1619 = vand.u32 2147483647, %v1615
        %v1620 = vand.u32 2147483647, %v1616
        %v1621 = vand.u32 2147483647, %v1617
        %v1622 = vmul.f32 %v1618, 0.3275911
        %v1623 = vmul.f32 %v1619, 0.3275911
        %v1624 = vmul.f32 %v1620, 0.3275911
        %v1625 = vmul.f32 %v1621, 0.3275911
        %v1626 = vadd.f32 %v1622, 1.0
        %v1627 = vadd.f32 %v1623, 1.0
        %v1628 = vadd.f32 %v1624, 1.0
        %v1629 = vadd.f32 %v1625, 1.0
        %v1630 = vrcp.pop %v1626
        %v1631 = vmul.f32 %v1626, %v1630
        %v1632 = vsub.f32 1.0, %v1631
        %v1633 = vmul.f32 %v1630, %v1632
        %v1634 = vadd.f32 %v1630, %v1633
        %vm1635 = vweird.f32 %v1626
        %vm1636 = vweird.f32 %v1630
        %vm1637 = vmor %vm1635, %vm1636
        %v1638 = vsel %vm1637, %v1630, %v1634
        %v1639 = vand.u32 2147483647, %v1626
        %vm1640 = vcmp.eq.f32.partialorder %v1639, 8.507059e+37
        %v1641 = vand.u32 %v1626, 2147483648
        %v1642 = vor.u32 1.1754944e-38, %v1641
        %v1643 = vsel %vm1640, %v1642, %v1638
        %v1644 = vmul.f32 1.0, %v1643
        %v1645 = vrcp.pop %v1627
        %v1646 = vmul.f32 %v1627, %v1645
        %v1647 = vsub.f32 1.0, %v1646
        %v1648 = vmul.f32 %v1645, %v1647
        %v1649 = vadd.f32 %v1645, %v1648
        %vm1650 = vweird.f32 %v1627
        %vm1651 = vweird.f32 %v1645
        %vm1652 = vmor %vm1650, %vm1651
        %v1653 = vsel %vm1652, %v1645, %v1649
        %v1654 = vand.u32 2147483647, %v1627
        %vm1655 = vcmp.eq.f32.partialorder %v1654, 8.507059e+37
        %v1656 = vand.u32 %v1627, 2147483648
        %v1657 = vor.u32 1.1754944e-38, %v1656
        %v1658 = vsel %vm1655, %v1657, %v1653
        %v1659 = vmul.f32 1.0, %v1658
        %v1660 = vrcp.pop %v1628
        %v1661 = vmul.f32 %v1628, %v1660
        %v1662 = vsub.f32 1.0, %v1661
        %v1663 = vmul.f32 %v1660, %v1662
        %v1664 = vadd.f32 %v1660, %v1663
        %vm1665 = vweird.f32 %v1628
        %vm1666 = vweird.f32 %v1660
        %vm1667 = vmor %vm1665, %vm1666
        %v1668 = vsel %vm1667, %v1660, %v1664
        %v1669 = vand.u32 2147483647, %v1628
        %vm1670 = vcmp.eq.f32.partialorder %v1669, 8.507059e+37
        %v1671 = vand.u32 %v1628, 2147483648
        %v1672 = vor.u32 1.1754944e-38, %v1671
        %v1673 = vsel %vm1670, %v1672, %v1668
        %v1674 = vmul.f32 1.0, %v1673
        %v1675 = vrcp.pop %v1629
        %v1676 = vmul.f32 %v1629, %v1675
        %v1677 = vsub.f32 1.0, %v1676
        %v1678 = vmul.f32 %v1675, %v1677
        %v1679 = vadd.f32 %v1675, %v1678
        %vm1680 = vweird.f32 %v1629
        %vm1681 = vweird.f32 %v1675
        %vm1682 = vmor %vm1680, %vm1681
        %v1683 = vsel %vm1682, %v1675, %v1679
        %v1684 = vand.u32 2147483647, %v1629
        %vm1685 = vcmp.eq.f32.partialorder %v1684, 8.507059e+37
        %v1686 = vand.u32 %v1629, 2147483648
        %v1687 = vor.u32 1.1754944e-38, %v1686
        %v1688 = vsel %vm1685, %v1687, %v1683
        %v1689 = vmul.f32 1.0, %v1688
        %v1690 = vmul.f32 %v1644, 1.0614054
        %v1691 = vmul.f32 %v1659, 1.0614054
        %v1692 = vmul.f32 %v1674, 1.0614054
        %v1693 = vmul.f32 %v1689, 1.0614054
        %v1694 = vadd.f32 %v1690, -1.4531521
        %v1695 = vadd.f32 %v1691, -1.4531521
        %v1696 = vadd.f32 %v1692, -1.4531521
        %v1697 = vadd.f32 %v1693, -1.4531521
        %v1698 = vmul.f32 %v1694, %v1644
        %v1699 = vmul.f32 %v1695, %v1659
        %v1700 = vmul.f32 %v1696, %v1674
        %v1701 = vmul.f32 %v1697, %v1689
        %v1702 = vadd.f32 %v1698, 1.4214138
        %v1703 = vadd.f32 %v1699, 1.4214138
        %v1704 = vadd.f32 %v1700, 1.4214138
        %v1705 = vadd.f32 %v1701, 1.4214138
        %v1706 = vmul.f32 %v1702, %v1644
        %v1707 = vmul.f32 %v1703, %v1659
        %v1708 = vmul.f32 %v1704, %v1674
        %v1709 = vmul.f32 %v1705, %v1689
        %v1710 = vadd.f32 %v1706, -0.28449672
        %v1711 = vadd.f32 %v1707, -0.28449672
        %v1712 = vadd.f32 %v1708, -0.28449672
        %v1713 = vadd.f32 %v1709, -0.28449672
        %v1714 = vmul.f32 %v1710, %v1644
        %v1715 = vmul.f32 %v1711, %v1659
        %v1716 = vmul.f32 %v1712, %v1674
        %v1717 = vmul.f32 %v1713, %v1689
        %v1718 = vadd.f32 %v1714, 0.2548296
        %v1719 = vadd.f32 %v1715, 0.2548296
        %v1720 = vadd.f32 %v1716, 0.2548296
        %v1721 = vadd.f32 %v1717, 0.2548296
        %v1722 = vmul.f32 %v1718, %v1644
        %v1723 = vmul.f32 %v1719, %v1659
        %v1724 = vmul.f32 %v1720, %v1674
        %v1725 = vmul.f32 %v1721, %v1689
        %v1726 = vsub.f32 0.0, %v1618
        %v1727 = vsub.f32 0.0, %v1619
        %v1728 = vsub.f32 0.0, %v1620
        %v1729 = vsub.f32 0.0, %v1621
        %v1730 = vmul.f32 %v1726, %v1618
        %v1731 = vmul.f32 %v1727, %v1619
        %v1732 = vmul.f32 %v1728, %v1620
        %v1733 = vmul.f32 %v1729, %v1621
        %v1734 = vmul.f32 %v1730, 1.442695
        %v1735 = vpow.pop %v1734
        %v1736 = vmul.f32 %v1731, 1.442695
        %v1737 = vpow.pop %v1736
        %v1738 = vmul.f32 %v1732, 1.442695
        %v1739 = vpow.pop %v1738
        %v1740 = vmul.f32 %v1733, 1.442695
        %v1741 = vpow.pop %v1740
        %v1742 = vmul.f32 %v1722, %v1735
        %v1743 = vmul.f32 %v1723, %v1737
        %v1744 = vmul.f32 %v1724, %v1739
        %v1745 = vmul.f32 %v1725, %v1741
        %v1746 = vsub.f32 1.0, %v1742
        %v1747 = vsub.f32 1.0, %v1743
        %v1748 = vsub.f32 1.0, %v1744
        %v1749 = vsub.f32 1.0, %v1745
        %vm1750 = vcmp.ge.f32.partialorder %v1614, 0.0
        %vm1751 = vcmp.ge.f32.partialorder %v1615, 0.0
        %vm1752 = vcmp.ge.f32.partialorder %v1616, 0.0
        %vm1753 = vcmp.ge.f32.partialorder %v1617, 0.0
        %v1754 = vsub.f32 0.0, %v1746
        %v1755 = vsub.f32 0.0, %v1747
        %v1756 = vsub.f32 0.0, %v1748
        %v1757 = vsub.f32 0.0, %v1749
        %v1758 = vsel %vm1750, %v1746, %v1754
        %v1759 = vsel %vm1751, %v1747, %v1755
        %v1760 = vsel %vm1752, %v1748, %v1756
        %v1761 = vsel %vm1753, %v1749, %v1757
        %v1762 = vadd.f32 %v1758, 1.0
        %v1763 = vadd.f32 %v1759, 1.0
        %v1764 = vadd.f32 %v1760, 1.0
        %v1765 = vadd.f32 %v1761, 1.0
        %v1766 = vmul.f32 %v1610, %v1762
        %v1767 = vmul.f32 %v1611, %v1763
        %v1768 = vmul.f32 %v1612, %v1764
        %v1769 = vmul.f32 %v1613, %v1765
        %v1770 = vpack.c.bf16 %v1768, %v1766
        %v1771 = vpack.c.bf16 %v1769, %v1767
        %v1772 = vld [vmem:[#allocation10] sm:$0xf]
        %v1773 = vld [vmem:[#allocation10 + $0x4] sm:$0xf]
        %v1774 = vld [vmem:[#allocation10 + $0x8] sm:$0xf]
        %v1775 = vld [vmem:[#allocation10 + $0xc] sm:$0xf]
        %v1776 = vld [vmem:[#allocation10 + $0x10] sm:$0xf]
        %v1777 = vld [vmem:[#allocation10 + $0x14] sm:$0xf]
        %v1778 = vld [vmem:[#allocation10 + $0x18] sm:$0xf]
        %v1779 = vld [vmem:[#allocation10 + $0x1c] sm:$0xf]
        %v1780 = vld [vmem:[#allocation10 + $0x20] sm:$0xf]
        %v1781 = vld [vmem:[#allocation10 + $0x24] sm:$0xf]
        %v1782 = vld [vmem:[#allocation10 + $0x28] sm:$0xf]
        %v1783 = vld [vmem:[#allocation10 + $0x2c] sm:$0xf]
        %v1784 = vld [vmem:[#allocation10 + $0x30] sm:$0xf]
        %v1785 = vld [vmem:[#allocation10 + $0x34] sm:$0xf]
        %v1786 = vld [vmem:[#allocation10 + $0x38] sm:$0xf]
        %v1787 = vld [vmem:[#allocation10 + $0x3c] sm:$0xf]
        %v1788 = vld [vmem:[#allocation10 + $0x40] sm:$0xf]
        %v1789 = vld [vmem:[#allocation10 + $0x44] sm:$0xf]
        %v1790 = vld [vmem:[#allocation10 + $0x48] sm:$0xf]
        %v1791 = vld [vmem:[#allocation10 + $0x4c] sm:$0xf]
        %v1792 = vld [vmem:[#allocation10 + $0x50] sm:$0xf]
        %v1793 = vld [vmem:[#allocation10 + $0x54] sm:$0xf]
        %v1794 = vld [vmem:[#allocation10 + $0x58] sm:$0xf]
        %v1795 = vld [vmem:[#allocation10 + $0x5c] sm:$0xf]
        %v1796 = vld [vmem:[#allocation10 + $0x60] sm:$0xf]
        %v1797 = vld [vmem:[#allocation10 + $0x64] sm:$0xf]
        %v1798 = vld [vmem:[#allocation10 + $0x68] sm:$0xf]
        %v1799 = vld [vmem:[#allocation10 + $0x6c] sm:$0xf]
        %v1800 = vld [vmem:[#allocation10 + $0x70] sm:$0xf]
        %v1801 = vld [vmem:[#allocation10 + $0x74] sm:$0xf]
        %v1802 = vld [vmem:[#allocation10 + $0x78] sm:$0xf]
        %v1803 = vld [vmem:[#allocation10 + $0x7c] sm:$0xf]
        %v1804 = vld [vmem:[#allocation11] sm:$0x1]
        %v1806 = vperm.slane %v1804, 0
        %v1840 = vunpack.c.l.b16 %v1772
        %v1841 = vunpack.c.l.b16 %v1773
        %v1842 = vunpack.c.l.b16 %v1774
        %v1843 = vunpack.c.l.b16 %v1775
        %v1844 = vunpack.c.l.b16 %v1776
        %v1845 = vunpack.c.l.b16 %v1777
        %v1846 = vunpack.c.l.b16 %v1778
        %v1847 = vunpack.c.l.b16 %v1779
        %v1848 = vunpack.c.l.b16 %v1780
        %v1849 = vunpack.c.l.b16 %v1781
        %v1850 = vunpack.c.l.b16 %v1782
        %v1851 = vunpack.c.l.b16 %v1783
        %v1852 = vunpack.c.l.b16 %v1784
        %v1853 = vunpack.c.l.b16 %v1785
        %v1854 = vunpack.c.l.b16 %v1786
        %v1855 = vunpack.c.l.b16 %v1787
        %v1856 = vunpack.c.l.b16 %v1788
        %v1857 = vunpack.c.l.b16 %v1789
        %v1858 = vunpack.c.l.b16 %v1790
        %v1859 = vunpack.c.l.b16 %v1791
        %v1860 = vunpack.c.l.b16 %v1792
        %v1861 = vunpack.c.l.b16 %v1793
        %v1862 = vunpack.c.l.b16 %v1794
        %v1863 = vunpack.c.l.b16 %v1795
        %v1864 = vunpack.c.l.b16 %v1796
        %v1865 = vunpack.c.l.b16 %v1797
        %v1866 = vunpack.c.l.b16 %v1798
        %v1867 = vunpack.c.l.b16 %v1799
        %v1868 = vunpack.c.l.b16 %v1800
        %v1869 = vunpack.c.l.b16 %v1801
        %v1870 = vunpack.c.l.b16 %v1802
        %v1871 = vunpack.c.l.b16 %v1803
        %v1872 = vpack.c.b16 %v1841, %v1840
        %v1873 = vpack.c.b16 %v1843, %v1842
        %v1874 = vpack.c.b16 %v1845, %v1844
        %v1875 = vpack.c.b16 %v1847, %v1846
        %v1876 = vpack.c.b16 %v1849, %v1848
        %v1877 = vpack.c.b16 %v1851, %v1850
        %v1878 = vpack.c.b16 %v1853, %v1852
        %v1879 = vpack.c.b16 %v1855, %v1854
        %v1880 = vpack.c.b16 %v1857, %v1856
        %v1881 = vpack.c.b16 %v1859, %v1858
        %v1882 = vpack.c.b16 %v1861, %v1860
        %v1883 = vpack.c.b16 %v1863, %v1862
        %v1884 = vpack.c.b16 %v1865, %v1864
        %v1885 = vpack.c.b16 %v1867, %v1866
        %v1886 = vpack.c.b16 %v1869, %v1868
        %v1887 = vpack.c.b16 %v1871, %v1870
        %1904 = vmatpush.bf16.msra.mxu0 %v1879
        %1905 = vmatpush.bf16.msra.mxu0 %v1878
        %1906 = vmatpush.bf16.msra.mxu0 %v1877
        %1907 = vmatpush.bf16.msra.mxu0 %v1876
        %1908 = vmatpush.bf16.msra.mxu0 %v1875
        %1909 = vmatpush.bf16.msra.mxu0 %v1874
        %1910 = vmatpush.bf16.msra.mxu0 %v1873
        %1911 = vmatpush.bf16.msra.mxu0 %v1872
        %1912 = vmatmul.bf16.gmra.mxu0 %v1770
        %v1913 = vpop.f32.mrf.mxu0
        %v1914 = vadd.f32 %v1806, %v1913
        %v1915 = vpop.f32.mrf.mxu0
        %v1916 = vadd.f32 %v1806, %v1915
        %1917 = vdwg.mxu0
        %1918 = vmatpush.bf16.msra.mxu0 %v1887
        %1919 = vmatpush.bf16.msra.mxu0 %v1886
        %1920 = vmatpush.bf16.msra.mxu0 %v1885
        %1921 = vmatpush.bf16.msra.mxu0 %v1884
        %1922 = vmatpush.bf16.msra.mxu0 %v1883
        %1923 = vmatpush.bf16.msra.mxu0 %v1882
        %1924 = vmatpush.bf16.msra.mxu0 %v1881
        %1925 = vmatpush.bf16.msra.mxu0 %v1880
        %1926 = vmatmul.bf16.gmra.mxu0 %v1771
        %v1927 = vpop.f32.mrf.mxu0
        %v1928 = vadd.f32 %v1914, %v1927
        %v1929 = vpop.f32.mrf.mxu0
        %v1930 = vadd.f32 %v1916, %v1929
        %1931 = vdwg.mxu0
        %v1932 = vadd.f32 %v1425, %v1928
        %v1933 = vadd.f32 %v1426, %v1930
        %1934 = vst [vmem:[%s505] sm:$0xff] %v1932
        %1935 = vst [vmem:[%s505 + $0x8] sm:$0xff] %v1933
        %p1936 = scmp.lt.s32.totalorder %s27, 1
        %s1937 = scalar_select %p1936, %s27, 1
        %s1938 = smul.addr %s1937, 2
        %s1939 = smul.addr %s1938, 8
        %s1940 = scalar_lea.vmem %s13, %s1939
        // Predicated region
        $region89: #{attention_block.1} parent=71 // pred_check
          %p1941 = pneg %p323
        $region90: #{attention_block.1} parent=71 // pred_check_branch
          %1943 = sbr.rel (%p1941) target = $region92
        $region91: #{attention_block.1} parent=71 // pred_region
          _
        $region92: #{attention_block.1} parent=71 // pred_fallthru
          _
      $region72: #{attention_block.1} parent=5 // pred_fallthru
        _
      %p1944 = scmp.le.s32.totalorder 2, %s22
      // Predicated region
      $region93: #{attention_block.1} parent=5 // pred_check
        %p1945 = pneg %p1944
      $region94: #{attention_block.1} parent=5 // pred_check_branch
        %1947 = sbr.rel (%p1945) target = $region96
      $region95: #{attention_block.1} parent=5 // pred_region
        %s1948 = ssub.s32 %s22, 2
        // Predicated region
        $region97: #{attention_block.1} parent=95 // pred_check
          %p1949 = pneg %p329
        $region98: #{attention_block.1} parent=95 // pred_check_branch
          %1951 = sbr.rel (%p1949) target = $region100
        $region99: #{attention_block.1} parent=95 // pred_region
          %p1952 = scmp.lt.s32.totalorder %s28, 1
          %s1953 = scalar_select %p1952, %s28, 1
          %s1954 = smul.addr %s1953, 2
          %s1955 = smul.addr %s1954, 8
          %s1956 = scalar_lea.vmem %s13, %s1955
        $region100: #{attention_block.1} parent=95 // pred_fallthru
          _
      $region96: #{attention_block.1} parent=5 // pred_fallthru
        _
    $region6: #{attention_block.1} parent=1 // loop_footer
      %s26 = sadd.s32 1, %s22
    $region7: #{attention_block.1} parent=1 // loop_footer_branch
      %21 = sbr.rel target = $region3
    $region8: #{attention_block.1} parent=1 // loop_exit
      _
    %1957 = vsyncpa [#allocation7], 1
    %s1958 = scalar_lea.sflag [#allocation7], 1
    %1959 = vsyncpa %s1958, 1
    %1960 = vsyncpa [#allocation9], 1
    %1961 = vsyncpa [#allocation12], 1

</llo_original>
